<compile_context>
chip_gen: v5e
topology: v5e:2x2
jax: 0.10.0
libtpu: 0.0.40
codegen_flags: <defaults>
</compile_context>

<pallas_src>
import jax
import jax.numpy as jnp
from jax import lax
from jax.experimental import pallas as pl
from jax.experimental.pallas import tpu as pltpu


def _round_up(x, m):
    return (x + m - 1) // m * m


def _vmem_capacity_bytes():
    """Physical per-core VMEM; conservative (v7x) fallback if the query fails."""
    try:
        return int(pltpu.get_tpu_info().vmem_capacity_bytes)
    except Exception:
        return 64 * 1024 * 1024


def _working_set_bytes(n_keys, c, c8, tq, cn):
    """Rough per-core VMEM working set for one grid step (scratch + tiles + temps)."""
    fct = _round_up(n_keys, 16) * _round_up(c8, 128) * 2        # conv_c(x)^T bf16 scratch
    fdv = _round_up(c, 16) * _round_up(n_keys, 128) * 2         # conv_d(x)   bf16 scratch
    xkb = _round_up(c, 8) * _round_up(cn, 128) * 4              # streamed f32 key chunk
    tiles = 2 * 2 * _round_up(c, 8) * _round_up(tq, 128) * 4    # dbl-buffered in/out tiles
    temps = _round_up(n_keys, 8) * _round_up(tq, 128) * (4 + 2 + 4)  # scores f32 + p bf16 + slack
    params = 4 * (2 * c8 * c + c * c + 2 * c8 + c + 1)
    return fct + fdv + xkb + tiles + temps + params


def _plan(n_keys, c, c8, vmem_budget):
    """Pick (query tile TQ, padded query length, key-streaming chunk CN)."""
    # Key-projection streaming chunk (lane-aligned when possible).
    cn = n_keys
    for cand in (512, 256, 128):
        if n_keys % cand == 0:
            cn = cand
            break
    # Query tiling; pad the query axis up to a multiple of 128 when needed
    # (padded query columns are discarded, keys are untouched).
    if n_keys % 128 == 0:
        n_pad = n_keys
    elif n_keys <= 256:
        return n_keys, n_keys, cn          # tiny maps: one full-axis tile
    else:
        n_pad = _round_up(n_keys, 128)
    tq = 128
    for cand in (512, 256, 128):
        if n_pad % cand == 0 and _working_set_bytes(n_keys, c, c8, cand, cn) <= vmem_budget:
            tq = cand
            break
    return tq, n_pad, cn


def _pam_kernel(xk_hbm,            # (B, C, N)   f32  HBM (pl.ANY): keys/values source
                xq_ref,            # (1, C, TQ)  f32  query tile (also the residual)
                wb_ref,            # (C8, C)     bf16
                bb_ref,            # (C8, 1)     f32
                wc_ref,            # (C8, C)     bf16
                bc_ref,            # (C8, 1)     f32
                wd_ref,            # (C, C)      bf16
                bd_ref,            # (C, 1)      f32
                alpha_ref,         # (1, 1)      f32  SMEM
                o_ref,             # (1, C, TQ)  f32
                fct_ref,           # scratch (N, C8) bf16 : conv_c(x)^T (keys)
                fdv_ref,           # scratch (C, N)  bf16 : conv_d(x)   (values)
                xk_buf,            # scratch (C, CN) f32  : streamed raw key chunk
                copy_sem):         # DMA completion semaphore for the key stream
    b = pl.program_id(0)
    q = pl.program_id(1)
    _, cn = xk_buf.shape
    n_keys = fdv_ref.shape[1]
    n_chunks = n_keys // cn

    # --- Key/value 1x1-conv projections: once per batch element, streamed in
    # --- N-chunks so the raw f32 keys are never fully resident in VMEM.
    @pl.when(q == 0)
    def _():
        def proj_chunk(ci, carry):
            start = pl.multiple_of(ci * cn, cn)
            cp = pltpu.make_async_copy(
                xk_hbm.at[b, :, pl.ds(start, cn)], xk_buf, copy_sem)
            cp.start()
            cp.wait()
            xk = xk_buf[...].astype(jnp.bfloat16)                            # (C, CN)
            fc = jnp.dot(wc_ref[...], xk,
                         preferred_element_type=jnp.float32) + bc_ref[...]   # (C8, CN)
            fd = jnp.dot(wd_ref[...], xk,
                         preferred_element_type=jnp.float32) + bd_ref[...]   # (C, CN)
            # conv_c(x) is stored transposed ONCE per batch: every per-tile
            # matmul below is then a plain (no-transpose) MXU contraction.
            fct_ref[pl.ds(start, cn), :] = fc.T.astype(jnp.bfloat16)
            fdv_ref[:, pl.ds(start, cn)] = fd.astype(jnp.bfloat16)
            return carry
        lax.fori_loop(0, n_chunks, proj_chunk, 0, unroll=n_chunks <= 4)

    # --- Query projection for this tile; fb stays (C8, TQ): no x_q transpose.
    x_q = xq_ref[0]                                                          # (C, TQ) f32
    fb = jnp.dot(wb_ref[...], x_q.astype(jnp.bfloat16),
                 preferred_element_type=jnp.float32) + bb_ref[...]           # (C8, TQ)

    # --- Attention scores with keys on the sublane axis: (N, TQ).
    scores = jnp.dot(fct_ref[...], fb.astype(jnp.bfloat16),
                     preferred_element_type=jnp.float32)                     # (N, TQ)

    # --- Softmax over keys (axis 0); exp in bf16, f32 denominator,
    # --- normalization deferred to the output scale.
    m = jnp.max(scores, axis=0, keepdims=True)                               # (1, TQ)
    p = jnp.exp((scores - m).astype(jnp.bfloat16))                           # (N, TQ) bf16
    denom = jnp.sum(p, axis=0, keepdims=True, dtype=jnp.float32)             # (1, TQ)

    # --- Unnormalized feat_e: plain (C, N) x (N, TQ) MXU matmul, K = N.
    fe = jnp.dot(fdv_ref[...], p, preferred_element_type=jnp.float32)        # (C, TQ)

    # --- Fold softmax normalization and alpha into one per-column scale.
    scale = alpha_ref[0, 0] * pl.reciprocal(denom, approx=True)              # (1, TQ)
    o_ref[0] = fe * scale + x_q


@jax.jit
def position_attention_module(x_nchw, wb, bb, wc, bc, wd, bd, alpha):
    """Forward pass of _PositionAttentionModule.

    x_nchw : (B, C, H, W) f32
    wb, wc : (C//8, C) f32   (PyTorch conv weight[:, :, 0, 0])
    bb, bc : (C//8,)   f32
    wd     : (C, C)    f32
    bd     : (C,)      f32
    alpha  : (1,)      f32
    Returns (B, C, H, W) f32.
    """
    B, C, H, W = x_nchw.shape
    N = H * W
    C8 = wb.shape[0]

    cap = _vmem_capacity_bytes()
    budget = cap - 16 * 1024 * 1024           # headroom for compiler-internal scratch
    TQ, N_pad, CN = _plan(N, C, C8, budget)
    NQ = N_pad // TQ
    # TODO(synk): for very large N (>= ~8192 on v7x) add a flash-style key-chunked
    # online softmax so the (N, TQ) score block is never materialized; also a
    # megacore-split grid for B == 1 on v7x.

    # NCHW -> (B, C, N) is a free (contiguous) reshape: no HBM transpose.
    x_bcn = x_nchw.reshape(B, C, N)
    x_q = x_bcn if N_pad == N else jnp.pad(x_bcn, ((0, 0), (0, 0), (0, N_pad - N)))

    # Parameters: weights pre-cast to bf16 (PyTorch orientation, no transposes),
    # biases oriented for the (C, N) data layout, alpha as an SMEM scalar.
    wb_k = wb.astype(jnp.bfloat16)            # (C8, C)
    wc_k = wc.astype(jnp.bfloat16)            # (C8, C)
    wd_k = wd.astype(jnp.bfloat16)            # (C, C)
    bb_k = bb.reshape(C8, 1)
    bc_k = bc.reshape(C8, 1)
    bd_k = bd.reshape(C, 1)
    alpha_k = alpha.reshape(1, 1)

    # Advisory cost estimate for XLA's scheduler (includes output writeback).
    flops = (2 * B * N * C * (2 * C8 + C)     # conv_b/c/d projections
             + 2 * B * N_pad * N * (C8 + C))  # scores + feat_e
    transcendentals = B * N_pad * N
    bytes_accessed = (4 * B * C * (N + 2 * N_pad)       # keys + queries in, output out
                      + 2 * (2 * C8 * C + C * C) + 4 * (2 * C8 + C + 1))

    need = _working_set_bytes(N, C, C8, TQ, CN)
    vmem_limit = int(min(max(int(need * 1.25) + (4 << 20), 32 << 20), budget))

    out_padded = pl.pallas_call(
        _pam_kernel,
        out_shape=jax.ShapeDtypeStruct((B, C, N_pad), jnp.float32),
        grid_spec=pltpu.PrefetchScalarGridSpec(
            num_scalar_prefetch=0,
            grid=(B, NQ),
            in_specs=[
                pl.BlockSpec(memory_space=pl.ANY),                  # x (keys, raw HBM)
                pl.BlockSpec((1, C, TQ), lambda b, q: (b, 0, q)),   # x (query tile)
                pl.BlockSpec((C8, C), lambda b, q: (0, 0)),         # wb
                pl.BlockSpec((C8, 1), lambda b, q: (0, 0)),         # bb
                pl.BlockSpec((C8, C), lambda b, q: (0, 0)),         # wc
                pl.BlockSpec((C8, 1), lambda b, q: (0, 0)),         # bc
                pl.BlockSpec((C, C), lambda b, q: (0, 0)),          # wd
                pl.BlockSpec((C, 1), lambda b, q: (0, 0)),          # bd
                pl.BlockSpec(memory_space=pltpu.MemorySpace.SMEM),  # alpha
            ],
            out_specs=pl.BlockSpec((1, C, TQ), lambda b, q: (b, 0, q)),
            scratch_shapes=[
                pltpu.VMEM((N, C8), jnp.bfloat16),   # conv_c(x)^T  (keys)
                pltpu.VMEM((C, N), jnp.bfloat16),    # conv_d(x)    (values)
                pltpu.VMEM((C, CN), jnp.float32),    # streamed raw key chunk
                pltpu.SemaphoreType.DMA,             # key-chunk DMA completion
            ],
        ),
        compiler_params=pltpu.CompilerParams(
            # q axis is 'arbitrary': the per-batch key-projection scratch is
            # filled at q == 0 and reused by the later query tiles of that b.
            dimension_semantics=("parallel", "arbitrary"),
            vmem_limit_bytes=vmem_limit,
        ),
        cost_estimate=pl.CostEstimate(
            flops=flops,
            transcendentals=transcendentals,
            bytes_accessed=bytes_accessed,
        ),
    )(x_bcn, x_q, wb_k, bb_k, wc_k, bc_k, wd_k, bd_k, alpha_k)

    out = out_padded if N_pad == N else out_padded[:, :, :N]
    return out.reshape(B, C, H, W)


def _reference(x, wb, bb, wc, bc, wd, bd, alpha):
    """Pure-JAX f32 reference mirroring the PyTorch forward exactly."""
    B, C, H, W = x.shape
    N = H * W
    x_bcn = x.reshape(B, C, N)
    fb = jnp.einsum('kc,bcn->bkn', wb, x_bcn) + bb[None, :, None]   # (B, C8, N)
    fc = jnp.einsum('kc,bcn->bkn', wc, x_bcn) + bc[None, :, None]   # (B, C8, N)
    fd = jnp.einsum('kc,bcn->bkn', wd, x_bcn) + bd[None, :, None]   # (B, C, N)
    scores = jnp.einsum('bkn,bkm->bnm', fb, fc)                     # (B, N, N)
    attn = jax.nn.softmax(scores, axis=-1)
    fe = jnp.einsum('bcm,bnm->bcn', fd, attn)                       # (B, C, N)
    out = alpha[0] * fe + x_bcn
    return out.reshape(B, C, H, W)


if __name__ == "__main__":
    root = jax.random.PRNGKey(0)

    def make_inputs(B, C, H, W, key):
        C8 = C // 8
        kx, kwb, kbb, kwc, kbc, kwd, kbd = jax.random.split(key, 7)
        x = jax.random.normal(kx, (B, C, H, W), dtype=jnp.float32)
        # Parameters in PyTorch conv layout: weight (Cout, Cin), bias (Cout,).
        wb = 0.1 * jax.random.normal(kwb, (C8, C), dtype=jnp.float32)
        bb = 0.1 * jax.random.normal(kbb, (C8,), dtype=jnp.float32)
        wc = 0.1 * jax.random.normal(kwc, (C8, C), dtype=jnp.float32)
        bc = 0.1 * jax.random.normal(kbc, (C8,), dtype=jnp.float32)
        wd = 0.1 * jax.random.normal(kwd, (C, C), dtype=jnp.float32)
        bd = 0.1 * jax.random.normal(kbd, (C,), dtype=jnp.float32)
        # nn.Parameter(torch.zeros(1)) -> alpha init is 0; use a nonzero value
        # so the attention path is actually exercised.
        alpha = jnp.full((1,), 0.5, dtype=jnp.float32)
        return x, (wb, bb, wc, bc, wd, bd, alpha)

    # Case 0: N = 256 (lane-aligned).  Case 1: N = 400 (query axis padded to 512).
    for idx, (B, C, H, W) in enumerate([(2, 16, 16, 16), (1, 16, 20, 20)]):
        x, params = make_inputs(B, C, H, W, jax.random.fold_in(root, idx))
        out = jax.block_until_ready(position_attention_module(x, *params))
        ref = _reference(x, *params)
        assert out.shape == (B, C, H, W)
        max_err = float(jnp.max(jnp.abs(out - ref)))
        # bf16 MXU matmuls / bf16 exp with f32 accumulation and the approx
        # reciprocal -> loosened tolerance vs the pure-f32 reference.
        assert jnp.allclose(out, ref, atol=2e-2, rtol=2e-2), (
            f"case {idx}: max abs err {max_err}")

    print("KERNEL_OK")
</pallas_src>

<mosaic_0001>
module attributes {stable_mosaic.version = 11 : i64} {
  func.func @_pam_kernel(%arg0: i32, %arg1: i32, %arg2: memref<2x16x256xf32, #tpu.memory_space<any>>, %arg3: memref<1x16x256xf32, #tpu.memory_space<vmem>>, %arg4: memref<2x16xbf16, #tpu.memory_space<vmem>>, %arg5: memref<2x1xf32, #tpu.memory_space<vmem>>, %arg6: memref<2x16xbf16, #tpu.memory_space<vmem>>, %arg7: memref<2x1xf32, #tpu.memory_space<vmem>>, %arg8: memref<16x16xbf16, #tpu.memory_space<vmem>>, %arg9: memref<16x1xf32, #tpu.memory_space<vmem>>, %arg10: memref<1x1xf32, #tpu.memory_space<smem>>, %arg11: memref<1x16x256xf32, #tpu.memory_space<vmem>>, %arg12: memref<256x2xbf16, #tpu.memory_space<vmem>>, %arg13: memref<16x256xbf16, #tpu.memory_space<vmem>>, %arg14: memref<16x256xf32, #tpu.memory_space<vmem>>, %arg15: memref<!tpu.dma_semaphore, #tpu.memory_space<semaphore_mem>>) attributes {dimension_semantics = [#tpu.dimension_semantics<parallel>, #tpu.dimension_semantics<arbitrary>], iteration_bounds = array<i64: 2, 1>, scalar_prefetch = 0 : i64, scratch_operands = 4 : i64, tpu.core_type = #tpu.core_type<tc>, window_params = [{}, {transform_indices = @transform_1, window_bounds = array<i64: 1, 16, 256>}, {pipeline_mode = #tpu.pipeline_mode<synchronous>, transform_indices = @transform_2, window_bounds = array<i64: 2, 16>}, {pipeline_mode = #tpu.pipeline_mode<synchronous>, transform_indices = @transform_3, window_bounds = array<i64: 2, 1>}, {pipeline_mode = #tpu.pipeline_mode<synchronous>, transform_indices = @transform_4, window_bounds = array<i64: 2, 16>}, {pipeline_mode = #tpu.pipeline_mode<synchronous>, transform_indices = @transform_5, window_bounds = array<i64: 2, 1>}, {pipeline_mode = #tpu.pipeline_mode<synchronous>, transform_indices = @transform_6, window_bounds = array<i64: 16, 16>}, {pipeline_mode = #tpu.pipeline_mode<synchronous>, transform_indices = @transform_7, window_bounds = array<i64: 16, 1>}, {transform_indices = @transform_8, window_bounds = array<i64: 1, 1>}, {transform_indices = @transform_9, window_bounds = array<i64: 1, 16, 256>}]} {
    %c0_i32 = arith.constant 0 : i32
    %0 = arith.cmpi eq, %arg1, %c0_i32 : i32
    %1 = arith.extui %0 : i1 to i32
    %c0_i32_0 = arith.constant 0 : i32
    %2 = arith.cmpi ne, %1, %c0_i32_0 : i32
    scf.if %2 {
      %c0_i32_20 = arith.constant 0 : i32
      %c256_i32 = arith.constant 256 : i32
      %35 = arith.muli %c0_i32_20, %c256_i32 : i32
      %36 = tpu.assume_multiple %35, 256 : i32
      %c0_i32_21 = arith.constant 0 : i32
      %37 = tpu.memref_slice %arg2[%arg0, %c0_i32_21, %36] : memref<2x16x256xf32, #tpu.memory_space<any>> -> memref<1x16x256xf32, #tpu.memory_space<any>>
      %38 = tpu.memref_squeeze %37 : memref<1x16x256xf32, #tpu.memory_space<any>> -> memref<16x256xf32, #tpu.memory_space<any>>
      tpu.enqueue_dma source(%38 : memref<16x256xf32, #tpu.memory_space<any>>) target(%arg14 : memref<16x256xf32, #tpu.memory_space<vmem>>) target_semaphore(%arg15 : memref<!tpu.dma_semaphore, #tpu.memory_space<semaphore_mem>>)
      %c0_i32_22 = arith.constant 0 : i32
      %39 = tpu.memref_slice %arg2[%arg0, %c0_i32_22, %36] : memref<2x16x256xf32, #tpu.memory_space<any>> -> memref<1x16x256xf32, #tpu.memory_space<any>>
      %40 = tpu.memref_squeeze %39 : memref<1x16x256xf32, #tpu.memory_space<any>> -> memref<16x256xf32, #tpu.memory_space<any>>
      tpu.wait_dma2 semaphore(%arg15 : memref<!tpu.dma_semaphore, #tpu.memory_space<semaphore_mem>>) src(%40 : memref<16x256xf32, #tpu.memory_space<any>>) dst(%arg14 : memref<16x256xf32, #tpu.memory_space<vmem>>)
      %c0_23 = arith.constant 0 : index
      %c0_24 = arith.constant 0 : index
      %41 = vector.load %arg14[%c0_23, %c0_24] : memref<16x256xf32, #tpu.memory_space<vmem>>, vector<16x256xf32>
      %42 = arith.truncf %41 : vector<16x256xf32> to vector<16x256xbf16>
      %c0_25 = arith.constant 0 : index
      %c0_26 = arith.constant 0 : index
      %43 = vector.load %arg6[%c0_25, %c0_26] : memref<2x16xbf16, #tpu.memory_space<vmem>>, vector<2x16xbf16>
      %cst_27 = arith.constant dense<0.000000e+00> : vector<2x256xf32>
      %44 = tpu.matmul %43, %42, %cst_27 {dimension_numbers = #tpu.dot_dimension_numbers<[1], [0], [0], [1], [0, 0, 1, 1], [], []>} : vector<2x16xbf16>, vector<16x256xbf16>, vector<2x256xf32> -> vector<2x256xf32>
      %c0_28 = arith.constant 0 : index
      %c0_29 = arith.constant 0 : index
      %45 = vector.load %arg7[%c0_28, %c0_29] : memref<2x1xf32, #tpu.memory_space<vmem>>, vector<2x1xf32>
      %46 = vector.broadcast %45 : vector<2x1xf32> to vector<2x256xf32>
      %47 = arith.addf %44, %46 : vector<2x256xf32>
      %c0_30 = arith.constant 0 : index
      %c0_31 = arith.constant 0 : index
      %48 = vector.load %arg8[%c0_30, %c0_31] : memref<16x16xbf16, #tpu.memory_space<vmem>>, vector<16x16xbf16>
      %cst_32 = arith.constant dense<0.000000e+00> : vector<16x256xf32>
      %49 = tpu.matmul %48, %42, %cst_32 {dimension_numbers = #tpu.dot_dimension_numbers<[1], [0], [0], [1], [0, 0, 1, 1], [], []>} : vector<16x16xbf16>, vector<16x256xbf16>, vector<16x256xf32> -> vector<16x256xf32>
      %c0_33 = arith.constant 0 : index
      %c0_34 = arith.constant 0 : index
      %50 = vector.load %arg9[%c0_33, %c0_34] : memref<16x1xf32, #tpu.memory_space<vmem>>, vector<16x1xf32>
      %51 = vector.broadcast %50 : vector<16x1xf32> to vector<16x256xf32>
      %52 = arith.addf %49, %51 : vector<16x256xf32>
      %53 = tpu.transpose %47, [1, 0] : vector<2x256xf32> -> vector<256x2xf32>
      %54 = arith.truncf %53 : vector<256x2xf32> to vector<256x2xbf16>
      %55 = arith.index_cast %36 : i32 to index
      %c0_35 = arith.constant 0 : index
      %56 = vector.load %arg12[%55, %c0_35] : memref<256x2xbf16, #tpu.memory_space<vmem>>, vector<256x2xbf16>
      tpu.vector_store %arg12[%55, %c0_35], %54 {strides = array<i32>} : memref<256x2xbf16, #tpu.memory_space<vmem>>, vector<256x2xbf16>,
      %57 = arith.truncf %52 : vector<16x256xf32> to vector<16x256xbf16>
      %c0_36 = arith.constant 0 : index
      %58 = arith.index_cast %36 : i32 to index
      %59 = vector.load %arg13[%c0_36, %58] : memref<16x256xbf16, #tpu.memory_space<vmem>>, vector<16x256xbf16>
      tpu.vector_store %arg13[%c0_36, %58], %57 {strides = array<i32>} : memref<16x256xbf16, #tpu.memory_space<vmem>>, vector<16x256xbf16>,
      %c1_i32 = arith.constant 1 : i32
    } else {
    }
    %c0 = arith.constant 0 : index
    %c0_1 = arith.constant 0 : index
    %c0_2 = arith.constant 0 : index
    %3 = vector.load %arg3[%c0, %c0_1, %c0_2] : memref<1x16x256xf32, #tpu.memory_space<vmem>>, vector<1x16x256xf32>
    %4 = vector.shape_cast %3 : vector<1x16x256xf32> to vector<16x256xf32>
    %c0_3 = arith.constant 0 : index
    %c0_4 = arith.constant 0 : index
    %5 = vector.load %arg4[%c0_3, %c0_4] : memref<2x16xbf16, #tpu.memory_space<vmem>>, vector<2x16xbf16>
    %6 = arith.truncf %4 : vector<16x256xf32> to vector<16x256xbf16>
    %cst = arith.constant dense<0.000000e+00> : vector<2x256xf32>
    %7 = tpu.matmul %5, %6, %cst {dimension_numbers = #tpu.dot_dimension_numbers<[1], [0], [0], [1], [0, 0, 1, 1], [], []>} : vector<2x16xbf16>, vector<16x256xbf16>, vector<2x256xf32> -> vector<2x256xf32>
    %c0_5 = arith.constant 0 : index
    %c0_6 = arith.constant 0 : index
    %8 = vector.load %arg5[%c0_5, %c0_6] : memref<2x1xf32, #tpu.memory_space<vmem>>, vector<2x1xf32>
    %9 = vector.broadcast %8 : vector<2x1xf32> to vector<2x256xf32>
    %10 = arith.addf %7, %9 : vector<2x256xf32>
    %c0_7 = arith.constant 0 : index
    %c0_8 = arith.constant 0 : index
    %11 = vector.load %arg12[%c0_7, %c0_8] : memref<256x2xbf16, #tpu.memory_space<vmem>>, vector<256x2xbf16>
    %12 = arith.truncf %10 : vector<2x256xf32> to vector<2x256xbf16>
    %cst_9 = arith.constant dense<0.000000e+00> : vector<256x256xf32>
    %13 = tpu.matmul %11, %12, %cst_9 {dimension_numbers = #tpu.dot_dimension_numbers<[1], [0], [0], [1], [0, 0, 1, 1], [], []>} : vector<256x2xbf16>, vector<2x256xbf16>, vector<256x256xf32> -> vector<256x256xf32>
    %cst_10 = arith.constant dense<0xFF800000> : vector<256xf32>
    %14 = vector.multi_reduction <maximumf>, %13, %cst_10 [0] : vector<256x256xf32> to vector<256xf32>
    %15 = vector.shape_cast %14 : vector<256xf32> to vector<1x256xf32>
    %16 = vector.broadcast %15 : vector<1x256xf32> to vector<256x256xf32>
    %17 = arith.subf %13, %16 : vector<256x256xf32>
    %18 = arith.truncf %17 : vector<256x256xf32> to vector<256x256xbf16>
    %19 = math.exp %18 : vector<256x256xbf16>
    %20 = arith.extf %19 : vector<256x256xbf16> to vector<256x256xf32>
    %cst_11 = arith.constant dense<0.000000e+00> : vector<256xf32>
    %21 = vector.multi_reduction <add>, %20, %cst_11 [0] : vector<256x256xf32> to vector<256xf32>
    %22 = vector.shape_cast %21 : vector<256xf32> to vector<1x256xf32>
    %c0_12 = arith.constant 0 : index
    %c0_13 = arith.constant 0 : index
    %23 = vector.load %arg13[%c0_12, %c0_13] : memref<16x256xbf16, #tpu.memory_space<vmem>>, vector<16x256xbf16>
    %cst_14 = arith.constant dense<0.000000e+00> : vector<16x256xf32>
    %24 = tpu.matmul %23, %19, %cst_14 {dimension_numbers = #tpu.dot_dimension_numbers<[1], [0], [0], [1], [0, 0, 1, 1], [], []>} : vector<16x256xbf16>, vector<256x256xbf16>, vector<16x256xf32> -> vector<16x256xf32>
    %c0_15 = arith.constant 0 : index
    %c0_16 = arith.constant 0 : index
    %25 = memref.load %arg10[%c0_15, %c0_16] : memref<1x1xf32, #tpu.memory_space<smem>>
    %26 = tpu.reciprocal %22 {approx = true} : vector<1x256xf32> -> vector<1x256xf32>
    %27 = vector.broadcast %25 : f32 to vector<1x256xf32>
    %28 = arith.mulf %27, %26 : vector<1x256xf32>
    %29 = vector.broadcast %28 : vector<1x256xf32> to vector<16x256xf32>
    %30 = arith.mulf %24, %29 : vector<16x256xf32>
    %31 = arith.addf %30, %4 : vector<16x256xf32>
    %c0_17 = arith.constant 0 : index
    %c0_18 = arith.constant 0 : index
    %c0_19 = arith.constant 0 : index
    %32 = vector.load %arg11[%c0_17, %c0_18, %c0_19] : memref<1x16x256xf32, #tpu.memory_space<vmem>>, vector<1x16x256xf32>
    %33 = vector.shape_cast %32 : vector<1x16x256xf32> to vector<16x256xf32>
    %34 = vector.shape_cast %31 : vector<16x256xf32> to vector<1x16x256xf32>
    tpu.vector_store %arg11[%c0_17, %c0_18, %c0_19], %34 {strides = array<i32>} : memref<1x16x256xf32, #tpu.memory_space<vmem>>, vector<1x16x256xf32>,
    return
  }
  func.func @transform_1(%arg0: i32, %arg1: i32) -> (i32, i32, i32) {
    %c0_i32 = arith.constant 0 : i32
    %c0_i32_0 = arith.constant 0 : i32
    return %arg0, %c0_i32, %arg1 : i32, i32, i32
  }
  func.func @transform_2(%arg0: i32, %arg1: i32) -> (i32, i32) {
    %c0_i32 = arith.constant 0 : i32
    %c0_i32_0 = arith.constant 0 : i32
    %c0_i32_1 = arith.constant 0 : i32
    return %c0_i32, %c0_i32_0 : i32, i32
  }
  func.func @transform_3(%arg0: i32, %arg1: i32) -> (i32, i32) {
    %c0_i32 = arith.constant 0 : i32
    %c0_i32_0 = arith.constant 0 : i32
    %c0_i32_1 = arith.constant 0 : i32
    return %c0_i32, %c0_i32_0 : i32, i32
  }
  func.func @transform_4(%arg0: i32, %arg1: i32) -> (i32, i32) {
    %c0_i32 = arith.constant 0 : i32
    %c0_i32_0 = arith.constant 0 : i32
    %c0_i32_1 = arith.constant 0 : i32
    return %c0_i32, %c0_i32_0 : i32, i32
  }
  func.func @transform_5(%arg0: i32, %arg1: i32) -> (i32, i32) {
    %c0_i32 = arith.constant 0 : i32
    %c0_i32_0 = arith.constant 0 : i32
    %c0_i32_1 = arith.constant 0 : i32
    return %c0_i32, %c0_i32_0 : i32, i32
  }
  func.func @transform_6(%arg0: i32, %arg1: i32) -> (i32, i32) {
    %c0_i32 = arith.constant 0 : i32
    %c0_i32_0 = arith.constant 0 : i32
    %c0_i32_1 = arith.constant 0 : i32
    return %c0_i32, %c0_i32_0 : i32, i32
  }
  func.func @transform_7(%arg0: i32, %arg1: i32) -> (i32, i32) {
    %c0_i32 = arith.constant 0 : i32
    %c0_i32_0 = arith.constant 0 : i32
    %c0_i32_1 = arith.constant 0 : i32
    return %c0_i32, %c0_i32_0 : i32, i32
  }
  func.func @transform_8(%arg0: i32, %arg1: i32) -> (i32, i32) {
    %c0_i32 = arith.constant 0 : i32
    %c0_i32_0 = arith.constant 0 : i32
    %c0_i32_1 = arith.constant 0 : i32
    return %c0_i32, %c0_i32_0 : i32, i32
  }
  func.func @transform_9(%arg0: i32, %arg1: i32) -> (i32, i32, i32) {
    %c0_i32 = arith.constant 0 : i32
    %c0_i32_0 = arith.constant 0 : i32
    return %arg0, %c0_i32, %arg1 : i32, i32, i32
  }
}

</mosaic_0001>

<llo_original>
// kernel: position_attention_module.1
$region0: #{position_attention_module.1}
  #allocation0 [shape = 'u32[]', space=smem, size = 0x4, offset = 0x4, fixed_abs, tag = 'smem constant byte address 0x4 - core index']
  #allocation1 [shape = 'u32[72,128]{1,0:T(1,128)}', space=vmem, size = 0x9000, scoped, tag = 'internal scratch']
  #allocation2 [shape = 'bf16[256,2]{1,0:T(8,128)(2,1)}', space=vmem, size = 0x10000, scoped, tag = 'scratch operand']
  #allocation3 [shape = 'bf16[16,256]{1,0:T(8,128)(2,1)}', space=vmem, size = 0x2000, scoped, tag = 'scratch operand']
  #allocation4 [shape = 'f32[16,256]{1,0:T(8,128)}', space=vmem, size = 0x4000, scoped, tag = 'scratch operand']
  #allocation5 [shape = 's32[1]{0}', space=sflag, size = 0x4, scoped, tag = 'scratch operand']
  #allocation6 [shape = 'f32[1,1]{1,0:T(1,128)S(6)}', space=smem, size = 0x200, scoped, tag = 'scoped memory for position_attention_module.1']
  #allocation7 [shape = 's32[]', space=sflag, size = 0x4, offset = 0, fixed_abs, tag = 'sflag constant byte address 0x0 - dummy sync flag']
  %s0 = inlined_call_operand.vmem [shape: f32[2,16,256], index: 0, kind: input, shape index: {}, may-alias: {0,1}]
  %s1 = inlined_call_operand.vmem [shape: f32[2,16,256], index: 1, kind: input, shape index: {}, may-alias: {0,1}]
  %s2 = inlined_call_operand.vmem [shape: bf16[2,16], index: 2, kind: input, shape index: {}]
  %s3 = inlined_call_operand.vmem [shape: f32[2,1], index: 3, kind: input, shape index: {}]
  %s4 = inlined_call_operand.vmem [shape: bf16[2,16], index: 4, kind: input, shape index: {}]
  %s5 = inlined_call_operand.vmem [shape: f32[2,1], index: 5, kind: input, shape index: {}]
  %s6 = inlined_call_operand.vmem [shape: bf16[16,16], index: 6, kind: input, shape index: {}]
  %s7 = inlined_call_operand.vmem [shape: f32[16,1], index: 7, kind: input, shape index: {}]
  %s8 = inlined_call_operand.<no memory space> [shape: f32[1,1], index: 8, kind: input, shape index: {}]
  %s9 = inlined_call_operand.vmem [shape: f32[2,16,256], index: 9, kind: output, shape index: {}]
  %s10 = sld [smem:[#allocation0]]
  $region88: #{position_attention_module.1} parent=0
    _
  %s12 = ssub.s32 1, %s10
  %s13 = scalar_select 0, %s12, %s10
  %14 = sst [smem:[#allocation6]] %s8
  loop: start=0, step=1, limit=4
  $region2: #{position_attention_module.1} parent=0 // loop_pre_header
    _
  $region3: #{position_attention_module.1} parent=0 // loop_header
    %s16 = sphi 0, %s20
    %p17 = scmp.ge.s32.totalorder %s16, 4
    %s23 = sphi 0, %s35
    %s24 = sphi 0, %s31
    %s25 = sphi 0, %s23
    %s26 = sphi 0, %s24
    %s27 = sphi 0, %s25
    %s28 = sphi 0, %s26
    %s40 = sphi 0, %s42
    %s43 = sphi 0, %s40
    %s44 = sphi 0, %s43
    %s60 = sphi 0, %s44
    %s64 = sphi 0, %s64
    %s66 = sphi 0, %s64
    %s67 = sphi 0, %s66
    %s81 = sphi 0, %s67
    %s85 = sphi 0, %s85
    %s87 = sphi 0, %s85
    %s88 = sphi 0, %s87
    %s102 = sphi 0, %s88
    %s106 = sphi 0, %s106
    %s108 = sphi 0, %s106
    %s109 = sphi 0, %s108
    %s123 = sphi 0, %s109
    %s127 = sphi 0, %s127
    %s129 = sphi 0, %s127
    %s130 = sphi 0, %s129
    %s144 = sphi 0, %s130
    %s148 = sphi 0, %s148
    %s150 = sphi 0, %s148
    %s151 = sphi 0, %s150
    %s165 = sphi 0, %s151
    %s169 = sphi 0, %s169
    %s171 = sphi 0, %s169
    %s172 = sphi 0, %s171
    %s186 = sphi 0, %s172
    %s190 = sphi 0, %s190
    %s192 = sphi 0, %s190
    %s193 = sphi 0, %s192
    %s207 = sphi 0, %s193
    %s215 = sphi 0, %s217
    %s218 = sphi 0, %s215
    %s219 = sphi 0, %s218
    %s235 = sphi 0, %s219
  $region4: #{position_attention_module.1} parent=0 // loop_header_branch
    %19 = sbr.rel (%p17) target = $region8
  $region5: #{position_attention_module.1} parent=0 // loop_body
    %s21 = ssub.s32 %s16, 1
    %s22 = ssub.s32 %s16, 2
    %s29 = sadd.s32 1, %s24
    %p30 = scmp.ge.s32.totalorder %s29, 1
    %s31 = scalar_select %p30, 0, %s29
    %s32 = sadd.s32 1, %s23
    %s33 = scalar_select %p30, %s32, %s23
    %p34 = scmp.ge.s32.totalorder %s33, 2
    %s35 = scalar_select %p34, 0, %s33
    %s36 = ssub.s32 %s23, %s35
    %s37 = ssub.s32 %s24, %s31
    %s38 = sor.u32 %s36, %s37
    %p39 = scmp.eq.s32.totalorder %s38, 0
    %s41 = sadd.s32 %s40, 1
    %s42 = scalar_select %p39, %s40, %s41
    %p45 = pneg %p39
    %p46 = scmp.eq.s32.totalorder %s16, 1
    %p47 = por %p45, %p46
    %p48 = scmp.ne.s32.totalorder %s40, %s43
    %p49 = scmp.eq.s32.totalorder %s16, 0
    %p50 = por %p48, %p49
    %p51 = scmp.ne.s32.totalorder %s40, %s43
    %p52 = scmp.eq.s32.totalorder %s21, 1
    %p53 = por %p51, %p52
    %p54 = scmp.ne.s32.totalorder %s43, %s44
    %p55 = scmp.eq.s32.totalorder %s21, 0
    %p56 = por %p54, %p55
    %p57 = scmp.ne.s32.totalorder %s43, %s44
    %p58 = scmp.eq.s32.totalorder %s22, 1
    %p59 = por %p57, %p58
    %p61 = scmp.ne.s32.totalorder %s44, %s60
    %p62 = scmp.eq.s32.totalorder %s22, 0
    %p63 = por %p61, %p62
    %s65 = sadd.s32 %s64, 1
    %p68 = scmp.eq.s32.totalorder %s16, 1
    %p69 = scmp.ne.s32.totalorder %s64, %s66
    %p70 = scmp.eq.s32.totalorder %s16, 0
    %p71 = por %p69, %p70
    %p72 = scmp.ne.s32.totalorder %s64, %s66
    %p73 = scmp.eq.s32.totalorder %s21, 1
    %p74 = por %p72, %p73
    %p75 = scmp.ne.s32.totalorder %s66, %s67
    %p76 = scmp.eq.s32.totalorder %s21, 0
    %p77 = por %p75, %p76
    %p78 = scmp.ne.s32.totalorder %s66, %s67
    %p79 = scmp.eq.s32.totalorder %s22, 1
    %p80 = por %p78, %p79
    %p82 = scmp.ne.s32.totalorder %s67, %s81
    %p83 = scmp.eq.s32.totalorder %s22, 0
    %p84 = por %p82, %p83
    %s86 = sadd.s32 %s85, 1
    %p89 = scmp.eq.s32.totalorder %s16, 1
    %p90 = scmp.ne.s32.totalorder %s85, %s87
    %p91 = scmp.eq.s32.totalorder %s16, 0
    %p92 = por %p90, %p91
    %p93 = scmp.ne.s32.totalorder %s85, %s87
    %p94 = scmp.eq.s32.totalorder %s21, 1
    %p95 = por %p93, %p94
    %p96 = scmp.ne.s32.totalorder %s87, %s88
    %p97 = scmp.eq.s32.totalorder %s21, 0
    %p98 = por %p96, %p97
    %p99 = scmp.ne.s32.totalorder %s87, %s88
    %p100 = scmp.eq.s32.totalorder %s22, 1
    %p101 = por %p99, %p100
    %p103 = scmp.ne.s32.totalorder %s88, %s102
    %p104 = scmp.eq.s32.totalorder %s22, 0
    %p105 = por %p103, %p104
    %s107 = sadd.s32 %s106, 1
    %p110 = scmp.eq.s32.totalorder %s16, 1
    %p111 = scmp.ne.s32.totalorder %s106, %s108
    %p112 = scmp.eq.s32.totalorder %s16, 0
    %p113 = por %p111, %p112
    %p114 = scmp.ne.s32.totalorder %s106, %s108
    %p115 = scmp.eq.s32.totalorder %s21, 1
    %p116 = por %p114, %p115
    %p117 = scmp.ne.s32.totalorder %s108, %s109
    %p118 = scmp.eq.s32.totalorder %s21, 0
    %p119 = por %p117, %p118
    %p120 = scmp.ne.s32.totalorder %s108, %s109
    %p121 = scmp.eq.s32.totalorder %s22, 1
    %p122 = por %p120, %p121
    %p124 = scmp.ne.s32.totalorder %s109, %s123
    %p125 = scmp.eq.s32.totalorder %s22, 0
    %p126 = por %p124, %p125
    %s128 = sadd.s32 %s127, 1
    %p131 = scmp.eq.s32.totalorder %s16, 1
    %p132 = scmp.ne.s32.totalorder %s127, %s129
    %p133 = scmp.eq.s32.totalorder %s16, 0
    %p134 = por %p132, %p133
    %p135 = scmp.ne.s32.totalorder %s127, %s129
    %p136 = scmp.eq.s32.totalorder %s21, 1
    %p137 = por %p135, %p136
    %p138 = scmp.ne.s32.totalorder %s129, %s130
    %p139 = scmp.eq.s32.totalorder %s21, 0
    %p140 = por %p138, %p139
    %p141 = scmp.ne.s32.totalorder %s129, %s130
    %p142 = scmp.eq.s32.totalorder %s22, 1
    %p143 = por %p141, %p142
    %p145 = scmp.ne.s32.totalorder %s130, %s144
    %p146 = scmp.eq.s32.totalorder %s22, 0
    %p147 = por %p145, %p146
    %s149 = sadd.s32 %s148, 1
    %p152 = scmp.eq.s32.totalorder %s16, 1
    %p153 = scmp.ne.s32.totalorder %s148, %s150
    %p154 = scmp.eq.s32.totalorder %s16, 0
    %p155 = por %p153, %p154
    %p156 = scmp.ne.s32.totalorder %s148, %s150
    %p157 = scmp.eq.s32.totalorder %s21, 1
    %p158 = por %p156, %p157
    %p159 = scmp.ne.s32.totalorder %s150, %s151
    %p160 = scmp.eq.s32.totalorder %s21, 0
    %p161 = por %p159, %p160
    %p162 = scmp.ne.s32.totalorder %s150, %s151
    %p163 = scmp.eq.s32.totalorder %s22, 1
    %p164 = por %p162, %p163
    %p166 = scmp.ne.s32.totalorder %s151, %s165
    %p167 = scmp.eq.s32.totalorder %s22, 0
    %p168 = por %p166, %p167
    %s170 = sadd.s32 %s169, 1
    %p173 = scmp.eq.s32.totalorder %s16, 1
    %p174 = scmp.ne.s32.totalorder %s169, %s171
    %p175 = scmp.eq.s32.totalorder %s16, 0
    %p176 = por %p174, %p175
    %p177 = scmp.ne.s32.totalorder %s169, %s171
    %p178 = scmp.eq.s32.totalorder %s21, 1
    %p179 = por %p177, %p178
    %p180 = scmp.ne.s32.totalorder %s171, %s172
    %p181 = scmp.eq.s32.totalorder %s21, 0
    %p182 = por %p180, %p181
    %p183 = scmp.ne.s32.totalorder %s171, %s172
    %p184 = scmp.eq.s32.totalorder %s22, 1
    %p185 = por %p183, %p184
    %p187 = scmp.ne.s32.totalorder %s172, %s186
    %p188 = scmp.eq.s32.totalorder %s22, 0
    %p189 = por %p187, %p188
    %s191 = sadd.s32 %s190, 1
    %p194 = scmp.eq.s32.totalorder %s16, 1
    %p195 = scmp.ne.s32.totalorder %s190, %s192
    %p196 = scmp.eq.s32.totalorder %s16, 0
    %p197 = por %p195, %p196
    %p198 = scmp.ne.s32.totalorder %s190, %s192
    %p199 = scmp.eq.s32.totalorder %s21, 1
    %p200 = por %p198, %p199
    %p201 = scmp.ne.s32.totalorder %s192, %s193
    %p202 = scmp.eq.s32.totalorder %s21, 0
    %p203 = por %p201, %p202
    %p204 = scmp.ne.s32.totalorder %s192, %s193
    %p205 = scmp.eq.s32.totalorder %s22, 1
    %p206 = por %p204, %p205
    %p208 = scmp.ne.s32.totalorder %s193, %s207
    %p209 = scmp.eq.s32.totalorder %s22, 0
    %p210 = por %p208, %p209
    %s211 = ssub.s32 %s23, %s35
    %s212 = ssub.s32 %s24, %s31
    %s213 = sor.u32 %s211, %s212
    %p214 = scmp.eq.s32.totalorder %s213, 0
    %s216 = sadd.s32 %s215, 1
    %s217 = scalar_select %p214, %s215, %s216
    %p220 = pneg %p214
    %p221 = scmp.eq.s32.totalorder %s16, 1
    %p222 = por %p220, %p221
    %p223 = scmp.ne.s32.totalorder %s215, %s218
    %p224 = scmp.eq.s32.totalorder %s16, 0
    %p225 = por %p223, %p224
    %p226 = scmp.ne.s32.totalorder %s215, %s218
    %p227 = scmp.eq.s32.totalorder %s21, 1
    %p228 = por %p226, %p227
    %p229 = scmp.ne.s32.totalorder %s218, %s219
    %p230 = scmp.eq.s32.totalorder %s21, 0
    %p231 = por %p229, %p230
    %p232 = scmp.ne.s32.totalorder %s218, %s219
    %p233 = scmp.eq.s32.totalorder %s22, 1
    %p234 = por %p232, %p233
    %p236 = scmp.ne.s32.totalorder %s219, %s235
    %p237 = scmp.eq.s32.totalorder %s22, 0
    %p238 = por %p236, %p237
    %p239 = scmp.le.s32.totalorder 1, %s16
    %p240 = scmp.lt.s32.totalorder %s16, 3
    %p241 = pnand %p239, %p240
    %p242 = pneg %p241
    // Predicated region
    $region9: #{position_attention_module.1} parent=5 // pred_check
      _
    $region10: #{position_attention_module.1} parent=5 // pred_check_branch
      %244 = sbr.rel (%p241) target = $region12
    $region11: #{position_attention_module.1} parent=5 // pred_region
      %s245 = ssub.s32 %s16, 1
      // Predicated region
      $region13: #{position_attention_module.1} parent=11 // pred_check
        %p246 = pneg %p77
      $region14: #{position_attention_module.1} parent=11 // pred_check_branch
        %248 = sbr.rel (%p246) target = $region16
      $region15: #{position_attention_module.1} parent=11 // pred_region
        _
      $region16: #{position_attention_module.1} parent=11 // pred_fallthru
        _
      // Predicated region
      $region17: #{position_attention_module.1} parent=11 // pred_check
        %p249 = pneg %p98
      $region18: #{position_attention_module.1} parent=11 // pred_check_branch
        %251 = sbr.rel (%p249) target = $region20
      $region19: #{position_attention_module.1} parent=11 // pred_region
        _
      $region20: #{position_attention_module.1} parent=11 // pred_fallthru
        _
      // Predicated region
      $region21: #{position_attention_module.1} parent=11 // pred_check
        %p252 = pneg %p119
      $region22: #{position_attention_module.1} parent=11 // pred_check_branch
        %254 = sbr.rel (%p252) target = $region24
      $region23: #{position_attention_module.1} parent=11 // pred_region
        _
      $region24: #{position_attention_module.1} parent=11 // pred_fallthru
        _
      // Predicated region
      $region25: #{position_attention_module.1} parent=11 // pred_check
        %p255 = pneg %p140
      $region26: #{position_attention_module.1} parent=11 // pred_check_branch
        %257 = sbr.rel (%p255) target = $region28
      $region27: #{position_attention_module.1} parent=11 // pred_region
        _
      $region28: #{position_attention_module.1} parent=11 // pred_fallthru
        _
      // Predicated region
      $region29: #{position_attention_module.1} parent=11 // pred_check
        %p258 = pneg %p161
      $region30: #{position_attention_module.1} parent=11 // pred_check_branch
        %260 = sbr.rel (%p258) target = $region32
      $region31: #{position_attention_module.1} parent=11 // pred_region
        _
      $region32: #{position_attention_module.1} parent=11 // pred_fallthru
        _
      // Predicated region
      $region33: #{position_attention_module.1} parent=11 // pred_check
        %p261 = pneg %p182
      $region34: #{position_attention_module.1} parent=11 // pred_check_branch
        %263 = sbr.rel (%p261) target = $region36
      $region35: #{position_attention_module.1} parent=11 // pred_region
        _
      $region36: #{position_attention_module.1} parent=11 // pred_fallthru
        _
      // Predicated region
      $region37: #{position_attention_module.1} parent=11 // pred_check
        %p264 = pneg %p203
      $region38: #{position_attention_module.1} parent=11 // pred_check_branch
        %266 = sbr.rel (%p264) target = $region40
      $region39: #{position_attention_module.1} parent=11 // pred_region
        _
      $region40: #{position_attention_module.1} parent=11 // pred_fallthru
        _
    $region12: #{position_attention_module.1} parent=5 // pred_fallthru
      _
    %p267 = scmp.lt.s32.totalorder %s16, 2
    // Predicated region
    $region41: #{position_attention_module.1} parent=5 // pred_check
      %p268 = pneg %p267
    $region42: #{position_attention_module.1} parent=5 // pred_check_branch
      %270 = sbr.rel (%p268) target = $region44
    $region43: #{position_attention_module.1} parent=5 // pred_region
      // Predicated region
      $region45: #{position_attention_module.1} parent=43 // pred_check
        %p271 = pneg %p50
      $region46: #{position_attention_module.1} parent=43 // pred_check_branch
        %273 = sbr.rel (%p271) target = $region48
      $region47: #{position_attention_module.1} parent=43 // pred_region
        %s274 = smul.u32 2, %s24
        %p275 = scmp.lt.s32.totalorder %s23, 1
        %s276 = scalar_select %p275, %s23, 1
        %p277 = scmp.lt.s32.totalorder %s274, 1
        %s278 = scalar_select %p277, %s274, 1
        %s279 = smul.addr %s276, 4
        %s280 = sadd.s32 %s278, %s279
        %s281 = smul.addr %s280, 8
        %s282 = scalar_lea.vmem %s1, %s281
        %s283 = smul.u32 2, %s24
      $region48: #{position_attention_module.1} parent=43 // pred_fallthru
        _
    $region44: #{position_attention_module.1} parent=5 // pred_fallthru
      _
    %p284 = scmp.le.s32.totalorder 1, %s16
    %p285 = scmp.lt.s32.totalorder %s16, 3
    %p286 = pnand %p284, %p285
    %p287 = pneg %p286
    // Predicated region
    $region49: #{position_attention_module.1} parent=5 // pred_check
      _
    $region50: #{position_attention_module.1} parent=5 // pred_check_branch
      %289 = sbr.rel (%p286) target = $region52
    $region51: #{position_attention_module.1} parent=5 // pred_region
      %s290 = ssub.s32 %s16, 1
      %s291 = smul.u32 2, %s26
      %p292 = scmp.lt.s32.totalorder %s25, 1
      %s293 = scalar_select %p292, %s25, 1
      %p294 = scmp.lt.s32.totalorder %s291, 1
      %s295 = scalar_select %p294, %s291, 1
      %s296 = smul.addr %s293, 4
      %s297 = sadd.s32 %s295, %s296
      %s298 = smul.addr %s297, 8
      %s299 = scalar_lea.vmem %s1, %s298
      %p300 = pneg %p56
      %p301 = pneg %p53
      %p302 = pneg %p77
      %p303 = pneg %p74
      %p304 = pneg %p98
      %p305 = pneg %p95
      %p306 = pneg %p119
      %p307 = pneg %p116
      %p308 = pneg %p140
      %p309 = pneg %p137
      %p310 = pneg %p161
      %p311 = pneg %p158
      %p312 = pneg %p182
      %p313 = pneg %p179
      %p314 = pneg %p203
      %p315 = pneg %p200
      %p316 = pneg %p231
      %p317 = pneg %p228
      %s318 = smul.u32 2, %s26
      %p319 = scmp.lt.s32.totalorder %s25, 1
      %s320 = scalar_select %p319, %s25, 1
      %p321 = scmp.lt.s32.totalorder %s318, 1
      %s322 = scalar_select %p321, %s318, 1
      %s323 = smul.addr %s320, 4
      %s324 = sadd.s32 %s322, %s323
      %s325 = smul.addr %s324, 8
      %s326 = scalar_lea.vmem %s9, %s325
      %s327 = smul.u32 2, %s26
      %p328 = scmp.lt.s32.totalorder %s25, 1
      %s329 = scalar_select %p328, %s25, 1
      %p330 = scmp.lt.s32.totalorder %s327, 1
      %s331 = scalar_select %p330, %s327, 1
      %s332 = smul.addr %s329, 4
      %s333 = sadd.s32 %s331, %s332
      %s334 = smul.addr %s333, 8
      %s335 = scalar_lea.vmem %s1, %s334
      %s336 = smul.u32 2, %s26
      %s337 = smul.u32 2, %s26
      %p338 = scmp.lt.s32.totalorder %s25, 1
      %s339 = scalar_select %p338, %s25, 1
      %p340 = scmp.lt.s32.totalorder %s337, 1
      %s341 = scalar_select %p340, %s337, 1
      %s342 = smul.addr %s339, 4
      %s343 = sadd.s32 %s341, %s342
      %s344 = smul.addr %s343, 8
      %s345 = scalar_lea.vmem %s9, %s344
      %s346 = smul.u32 2, %s26
      %p348 = scmp.eq.s32.totalorder %s26, 0
      // Predicated region
      $region53: #{position_attention_module.1} parent=51 // pred_check
        %p349 = pneg %p348
      $region54: #{position_attention_module.1} parent=51 // pred_check_branch
        %351 = sbr.rel (%p349) target = $region56
      $region55: #{position_attention_module.1} parent=51 // pred_region
        %s352 = smul.u32 %s25, 4
        %s353 = sadd.s32 0, %s352
        %s354 = smul.addr %s353, 8
        %s355 = scalar_lea.vmem %s0, %s354
        // Predicated region
        $region57: #{position_attention_module.1} parent=55 // pred_check
          _
        $region58: #{position_attention_module.1} parent=55 // pred_check_branch
          %357 = sbr.rel (0) target = $region60
        $region59: #{position_attention_module.1} parent=55 // pred_region
          loop: start=0, step=1, limit=1
          $region61: #{position_attention_module.1} parent=59 // loop_pre_header
            _
          $region62: #{position_attention_module.1} parent=59 // loop_header
            %s359 = sphi 0, %s363
            %p360 = scmp.ge.s32.totalorder %s359, 1
            %s364 = sphi %s355, %s355
            %s365 = sphi [#allocation4], [#allocation4]
          $region63: #{position_attention_module.1} parent=59 // loop_header_branch
            %362 = sbr.rel (%p360) target = $region67
          $region64: #{position_attention_module.1} parent=59 // loop_body
            %v366 = vld [vmem:[%s364] sm:$0xff]
            %367 = vst [vmem:[%s365] sm:$0xff] %v366
            %v368 = vld [vmem:[%s364 + $0x8] sm:$0xff]
            %369 = vst [vmem:[%s365 + $0x8] sm:$0xff] %v368
            %v370 = vld [vmem:[%s364 + $0x10] sm:$0xff]
            %371 = vst [vmem:[%s365 + $0x10] sm:$0xff] %v370
            %v372 = vld [vmem:[%s364 + $0x18] sm:$0xff]
            %373 = vst [vmem:[%s365 + $0x18] sm:$0xff] %v372
          $region65: #{position_attention_module.1} parent=59 // loop_footer
            %s363 = sadd.s32 1, %s359
          $region66: #{position_attention_module.1} parent=59 // loop_footer_branch
            %358 = sbr.rel target = $region62
          $region67: #{position_attention_module.1} parent=59 // loop_exit
            _
        $region60: #{position_attention_module.1} parent=55 // pred_fallthru
          _
        // Predicated region
        $region68: #{position_attention_module.1} parent=55 // pred_check
          _
        $region69: #{position_attention_module.1} parent=55 // pred_check_branch
          %375 = sbr.rel target = $region71
        $region70: #{position_attention_module.1} parent=55 // pred_region
          _
        $region71: #{position_attention_module.1} parent=55 // pred_fallthru
          _
        // Predicated region
        $region72: #{position_attention_module.1} parent=55 // pred_check
          _
        $region73: #{position_attention_module.1} parent=55 // pred_check_branch
          %378 = sbr.rel (0) target = $region75
        $region74: #{position_attention_module.1} parent=55 // pred_region
          %379 = vsyncadd [#allocation5], 512
        $region75: #{position_attention_module.1} parent=55 // pred_fallthru
          _
        %s380 = smul.u32 8, 2
        %s381 = smul.u32 %s380, 2
        %s382 = sshll.u32 %s381, 4
        %383 = dma.done [#allocation5], %s382
        %v384 = vld [vmem:[#allocation4] sm:$0xff]
        %v385 = vld [vmem:[#allocation4 + $0x8] sm:$0xff]
        %v386 = vld [vmem:[#allocation4 + $0x10] sm:$0xff]
        %v387 = vld [vmem:[#allocation4 + $0x18] sm:$0xff]
        %v388 = vpack.c.bf16 %v386, %v384
        %v389 = vpack.c.bf16 %v387, %v385
        %v390 = vld [vmem:[%s4] sm:$0x1]
        %v391 = vld [vmem:[%s5] sm:$0x3]
        %393 = vset.pattern.permute.xlu0 0
        %394 = vperm.xlu0 %393, %v391
        %v395 = vpop.permute.xlu0 %394
        %vm397 = vcmask 130048
        %v399 = vsel %vm397, %v390, 0
        %401 = vmatpush.bf16.msra.mxu0 0
        %402 = vmatpush.bf16.msra.mxu0 0
        %403 = vmatpush.bf16.msra.mxu0 0
        %404 = vmatpush.bf16.msra.mxu0 0
        %405 = vmatpush.bf16.msra.mxu0 0
        %406 = vmatpush.bf16.msra.mxu0 0
        %407 = vmatpush.bf16.msra.mxu0 0
        %408 = vmatpush.bf16.msra.mxu0 %v388
        %409 = vmatmul.bf16.gmra.mxu0 %v399
        %v410 = vpop.f32.mrf.mxu0
        %v411 = vadd.f32 %v395, %v410
        %v412 = vpop.f32.mrf.mxu0
        %413 = vdwg.mxu0
        %414 = vmatpush.bf16.msra.mxu0 0
        %415 = vmatpush.bf16.msra.mxu0 0
        %416 = vmatpush.bf16.msra.mxu0 0
        %417 = vmatpush.bf16.msra.mxu0 0
        %418 = vmatpush.bf16.msra.mxu0 0
        %419 = vmatpush.bf16.msra.mxu0 0
        %420 = vmatpush.bf16.msra.mxu0 0
        %421 = vmatpush.bf16.msra.mxu0 %v389
        %422 = vmatmul.bf16.gmra.mxu0 %v399
        %v423 = vpop.f32.mrf.mxu0
        %v424 = vadd.f32 %v395, %v423
        %v425 = vpop.f32.mrf.mxu0
        %426 = vdwg.mxu0
        %v427 = vld [vmem:[%s6] sm:$0xf]
        %v428 = vld [vmem:[%s6 + $0x4] sm:$0xf]
        %v429 = vld [vmem:[%s7] sm:$0xff]
        %v430 = vld [vmem:[%s7 + $0x8] sm:$0xff]
        %432 = vset.pattern.permute.xlu0 0
        %433 = vperm.xlu0 %432, %v429
        %v434 = vpop.permute.xlu0 %433
        %437 = vset.pattern.permute.xlu0 0
        %438 = vperm.xlu0 %437, %v430
        %v439 = vpop.permute.xlu0 %438
        %v443 = vunpack.c.l.b16 %v427
        %v444 = vunpack.c.l.b16 %v428
        %v445 = vpack.c.b16 %v444, %v443
        %v447 = vsel %vm397, %v445, 0
        %449 = vmatpush.bf16.msra.mxu0 0
        %450 = vmatpush.bf16.msra.mxu0 0
        %451 = vmatpush.bf16.msra.mxu0 0
        %452 = vmatpush.bf16.msra.mxu0 0
        %453 = vmatpush.bf16.msra.mxu0 0
        %454 = vmatpush.bf16.msra.mxu0 0
        %455 = vmatpush.bf16.msra.mxu0 0
        %456 = vmatpush.bf16.msra.mxu0 %v388
        %457 = vmatmul.bf16.gmra.mxu0 %v447
        %v458 = vpop.f32.mrf.mxu0
        %v459 = vadd.f32 %v434, %v458
        %v460 = vpop.f32.mrf.mxu0
        %v461 = vadd.f32 %v439, %v460
        %462 = vdwg.mxu0
        %463 = vmatpush.bf16.msra.mxu0 0
        %464 = vmatpush.bf16.msra.mxu0 0
        %465 = vmatpush.bf16.msra.mxu0 0
        %466 = vmatpush.bf16.msra.mxu0 0
        %467 = vmatpush.bf16.msra.mxu0 0
        %468 = vmatpush.bf16.msra.mxu0 0
        %469 = vmatpush.bf16.msra.mxu0 0
        %470 = vmatpush.bf16.msra.mxu0 %v389
        %471 = vmatmul.bf16.gmra.mxu0 %v447
        %v472 = vpop.f32.mrf.mxu0
        %v473 = vadd.f32 %v434, %v472
        %v474 = vpop.f32.mrf.mxu0
        %v475 = vadd.f32 %v439, %v474
        %476 = vdwg.mxu0
        %477 = vxpose.xlu0.b32.start [1/16] %v411, 128
        %478 = vxpose.xlu0.b32.cont [2/16] 0.0, 128
        %479 = vxpose.xlu0.b32.cont [3/16] 0.0, 128
        %480 = vxpose.xlu0.b32.cont [4/16] 0.0, 128
        %481 = vxpose.xlu0.b32.cont [5/16] 0.0, 128
        %482 = vxpose.xlu0.b32.cont [6/16] 0.0, 128
        %483 = vxpose.xlu0.b32.cont [7/16] 0.0, 128
        %484 = vxpose.xlu0.b32.cont [8/16] 0.0, 128
        %485 = vxpose.xlu0.b32.cont [9/16] 0.0, 128
        %486 = vxpose.xlu0.b32.cont [10/16] 0.0, 128
        %487 = vxpose.xlu0.b32.cont [11/16] 0.0, 128
        %488 = vxpose.xlu0.b32.cont [12/16] 0.0, 128
        %489 = vxpose.xlu0.b32.cont [13/16] 0.0, 128
        %490 = vxpose.xlu0.b32.cont [14/16] 0.0, 128
        %491 = vxpose.xlu0.b32.cont [15/16] 0.0, 128
        %492 = vxpose.xlu0.b32.end [16/16] 0.0, 128
        %v493 = vpop.trf.xlu0
        %v494 = vpop.trf.xlu0
        %v495 = vpop.trf.xlu0
        %v496 = vpop.trf.xlu0
        %v497 = vpop.trf.xlu0
        %v498 = vpop.trf.xlu0
        %v499 = vpop.trf.xlu0
        %v500 = vpop.trf.xlu0
        %v501 = vpop.trf.xlu0
        %v502 = vpop.trf.xlu0
        %v503 = vpop.trf.xlu0
        %v504 = vpop.trf.xlu0
        %v505 = vpop.trf.xlu0
        %v506 = vpop.trf.xlu0
        %v507 = vpop.trf.xlu0
        %v508 = vpop.trf.xlu0
        %509 = vxpose.xlu0.b32.start [1/16] %v424, 128
        %510 = vxpose.xlu0.b32.cont [2/16] 0.0, 128
        %511 = vxpose.xlu0.b32.cont [3/16] 0.0, 128
        %512 = vxpose.xlu0.b32.cont [4/16] 0.0, 128
        %513 = vxpose.xlu0.b32.cont [5/16] 0.0, 128
        %514 = vxpose.xlu0.b32.cont [6/16] 0.0, 128
        %515 = vxpose.xlu0.b32.cont [7/16] 0.0, 128
        %516 = vxpose.xlu0.b32.cont [8/16] 0.0, 128
        %517 = vxpose.xlu0.b32.cont [9/16] 0.0, 128
        %518 = vxpose.xlu0.b32.cont [10/16] 0.0, 128
        %519 = vxpose.xlu0.b32.cont [11/16] 0.0, 128
        %520 = vxpose.xlu0.b32.cont [12/16] 0.0, 128
        %521 = vxpose.xlu0.b32.cont [13/16] 0.0, 128
        %522 = vxpose.xlu0.b32.cont [14/16] 0.0, 128
        %523 = vxpose.xlu0.b32.cont [15/16] 0.0, 128
        %524 = vxpose.xlu0.b32.end [16/16] 0.0, 128
        %v525 = vpop.trf.xlu0
        %v526 = vpop.trf.xlu0
        %v527 = vpop.trf.xlu0
        %v528 = vpop.trf.xlu0
        %v529 = vpop.trf.xlu0
        %v530 = vpop.trf.xlu0
        %v531 = vpop.trf.xlu0
        %v532 = vpop.trf.xlu0
        %v533 = vpop.trf.xlu0
        %v534 = vpop.trf.xlu0
        %v535 = vpop.trf.xlu0
        %v536 = vpop.trf.xlu0
        %v537 = vpop.trf.xlu0
        %v538 = vpop.trf.xlu0
        %v539 = vpop.trf.xlu0
        %v540 = vpop.trf.xlu0
        %v541 = vpack.c.bf16 %v493, %v493
        %v542 = vpack.c.bf16 %v494, %v494
        %v543 = vpack.c.bf16 %v495, %v495
        %v544 = vpack.c.bf16 %v496, %v496
        %v545 = vpack.c.bf16 %v497, %v497
        %v546 = vpack.c.bf16 %v498, %v498
        %v547 = vpack.c.bf16 %v499, %v499
        %v548 = vpack.c.bf16 %v500, %v500
        %v549 = vpack.c.bf16 %v501, %v501
        %v550 = vpack.c.bf16 %v502, %v502
        %v551 = vpack.c.bf16 %v503, %v503
        %v552 = vpack.c.bf16 %v504, %v504
        %v553 = vpack.c.bf16 %v505, %v505
        %v554 = vpack.c.bf16 %v506, %v506
        %v555 = vpack.c.bf16 %v507, %v507
        %v556 = vpack.c.bf16 %v508, %v508
        %v557 = vpack.c.bf16 %v525, %v525
        %v558 = vpack.c.bf16 %v526, %v526
        %v559 = vpack.c.bf16 %v527, %v527
        %v560 = vpack.c.bf16 %v528, %v528
        %v561 = vpack.c.bf16 %v529, %v529
        %v562 = vpack.c.bf16 %v530, %v530
        %v563 = vpack.c.bf16 %v531, %v531
        %v564 = vpack.c.bf16 %v532, %v532
        %v565 = vpack.c.bf16 %v533, %v533
        %v566 = vpack.c.bf16 %v534, %v534
        %v567 = vpack.c.bf16 %v535, %v535
        %v568 = vpack.c.bf16 %v536, %v536
        %v569 = vpack.c.bf16 %v537, %v537
        %v570 = vpack.c.bf16 %v538, %v538
        %v571 = vpack.c.bf16 %v539, %v539
        %v572 = vpack.c.bf16 %v540, %v540
        %vm573 = vcmask 11264
        %574 = vst.msk [vmem:[#allocation2] sm:$0xf] %vm573, %v541
        %575 = vst.msk [vmem:[#allocation2 + $0x4] sm:$0xf] %vm573, %v542
        %576 = vst.msk [vmem:[#allocation2 + $0x8] sm:$0xf] %vm573, %v543
        %577 = vst.msk [vmem:[#allocation2 + $0xc] sm:$0xf] %vm573, %v544
        %578 = vst.msk [vmem:[#allocation2 + $0x10] sm:$0xf] %vm573, %v545
        %579 = vst.msk [vmem:[#allocation2 + $0x14] sm:$0xf] %vm573, %v546
        %580 = vst.msk [vmem:[#allocation2 + $0x18] sm:$0xf] %vm573, %v547
        %581 = vst.msk [vmem:[#allocation2 + $0x1c] sm:$0xf] %vm573, %v548
        %582 = vst.msk [vmem:[#allocation2 + $0x20] sm:$0xf] %vm573, %v549
        %583 = vst.msk [vmem:[#allocation2 + $0x24] sm:$0xf] %vm573, %v550
        %584 = vst.msk [vmem:[#allocation2 + $0x28] sm:$0xf] %vm573, %v551
        %585 = vst.msk [vmem:[#allocation2 + $0x2c] sm:$0xf] %vm573, %v552
        %586 = vst.msk [vmem:[#allocation2 + $0x30] sm:$0xf] %vm573, %v553
        %587 = vst.msk [vmem:[#allocation2 + $0x34] sm:$0xf] %vm573, %v554
        %588 = vst.msk [vmem:[#allocation2 + $0x38] sm:$0xf] %vm573, %v555
        %589 = vst.msk [vmem:[#allocation2 + $0x3c] sm:$0xf] %vm573, %v556
        %590 = vst.msk [vmem:[#allocation2 + $0x40] sm:$0xf] %vm573, %v557
        %591 = vst.msk [vmem:[#allocation2 + $0x44] sm:$0xf] %vm573, %v558
        %592 = vst.msk [vmem:[#allocation2 + $0x48] sm:$0xf] %vm573, %v559
        %593 = vst.msk [vmem:[#allocation2 + $0x4c] sm:$0xf] %vm573, %v560
        %594 = vst.msk [vmem:[#allocation2 + $0x50] sm:$0xf] %vm573, %v561
        %595 = vst.msk [vmem:[#allocation2 + $0x54] sm:$0xf] %vm573, %v562
        %596 = vst.msk [vmem:[#allocation2 + $0x58] sm:$0xf] %vm573, %v563
        %597 = vst.msk [vmem:[#allocation2 + $0x5c] sm:$0xf] %vm573, %v564
        %598 = vst.msk [vmem:[#allocation2 + $0x60] sm:$0xf] %vm573, %v565
        %599 = vst.msk [vmem:[#allocation2 + $0x64] sm:$0xf] %vm573, %v566
        %600 = vst.msk [vmem:[#allocation2 + $0x68] sm:$0xf] %vm573, %v567
        %601 = vst.msk [vmem:[#allocation2 + $0x6c] sm:$0xf] %vm573, %v568
        %602 = vst.msk [vmem:[#allocation2 + $0x70] sm:$0xf] %vm573, %v569
        %603 = vst.msk [vmem:[#allocation2 + $0x74] sm:$0xf] %vm573, %v570
        %604 = vst.msk [vmem:[#allocation2 + $0x78] sm:$0xf] %vm573, %v571
        %605 = vst.msk [vmem:[#allocation2 + $0x7c] sm:$0xf] %vm573, %v572
        %v606 = vpack.c.bf16 %v473, %v459
        %v607 = vpack.c.bf16 %v475, %v461
        %608 = vst [vmem:[#allocation3] sm:$0xff] %v606
        %609 = vst [vmem:[#allocation3 + $0x8] sm:$0xff] %v607
      $region56: #{position_attention_module.1} parent=51 // pred_fallthru
        _
      %v610 = vld [vmem:[%s335] sm:$0xff]
      %v611 = vld [vmem:[%s335 + $0x8] sm:$0xff]
      %v612 = vld [vmem:[%s335 + $0x10] sm:$0xff]
      %v613 = vld [vmem:[%s335 + $0x18] sm:$0xff]
      %v614 = vld [vmem:[%s2] sm:$0x1]
      %v615 = vpack.c.bf16 %v612, %v610
      %v616 = vpack.c.bf16 %v613, %v611
      %v617 = vld [vmem:[%s3] sm:$0x3]
      %619 = vset.pattern.permute.xlu0 0
      %620 = vperm.xlu0 %619, %v617
      %v621 = vpop.permute.xlu0 %620
      %vm623 = vcmask 130048
      %v625 = vsel %vm623, %v614, 0
      %627 = vmatpush.bf16.msra.mxu0 0
      %628 = vmatpush.bf16.msra.mxu0 0
      %629 = vmatpush.bf16.msra.mxu0 0
      %630 = vmatpush.bf16.msra.mxu0 0
      %631 = vmatpush.bf16.msra.mxu0 0
      %632 = vmatpush.bf16.msra.mxu0 0
      %633 = vmatpush.bf16.msra.mxu0 0
      %634 = vmatpush.bf16.msra.mxu0 %v615
      %635 = vmatmul.bf16.gmra.mxu0 %v625
      %v636 = vpop.f32.mrf.mxu0
      %v637 = vadd.f32 %v621, %v636
      %v638 = vpop.f32.mrf.mxu0
      %639 = vdwg.mxu0
      %640 = vmatpush.bf16.msra.mxu0 0
      %641 = vmatpush.bf16.msra.mxu0 0
      %642 = vmatpush.bf16.msra.mxu0 0
      %643 = vmatpush.bf16.msra.mxu0 0
      %644 = vmatpush.bf16.msra.mxu0 0
      %645 = vmatpush.bf16.msra.mxu0 0
      %646 = vmatpush.bf16.msra.mxu0 0
      %647 = vmatpush.bf16.msra.mxu0 %v616
      %648 = vmatmul.bf16.gmra.mxu0 %v625
      %v649 = vpop.f32.mrf.mxu0
      %v650 = vadd.f32 %v621, %v649
      %v651 = vpop.f32.mrf.mxu0
      %652 = vdwg.mxu0
      %v653 = vld [vmem:[#allocation2] sm:$0xf]
      %v654 = vld [vmem:[#allocation2 + $0x4] sm:$0xf]
      %v655 = vld [vmem:[#allocation2 + $0x8] sm:$0xf]
      %v656 = vld [vmem:[#allocation2 + $0xc] sm:$0xf]
      %v657 = vld [vmem:[#allocation2 + $0x10] sm:$0xf]
      %v658 = vld [vmem:[#allocation2 + $0x14] sm:$0xf]
      %v659 = vld [vmem:[#allocation2 + $0x18] sm:$0xf]
      %v660 = vld [vmem:[#allocation2 + $0x1c] sm:$0xf]
      %v661 = vld [vmem:[#allocation2 + $0x20] sm:$0xf]
      %v662 = vld [vmem:[#allocation2 + $0x24] sm:$0xf]
      %v663 = vld [vmem:[#allocation2 + $0x28] sm:$0xf]
      %v664 = vld [vmem:[#allocation2 + $0x2c] sm:$0xf]
      %v665 = vld [vmem:[#allocation2 + $0x30] sm:$0xf]
      %v666 = vld [vmem:[#allocation2 + $0x34] sm:$0xf]
      %v667 = vld [vmem:[#allocation2 + $0x38] sm:$0xf]
      %v668 = vld [vmem:[#allocation2 + $0x3c] sm:$0xf]
      %v669 = vld [vmem:[#allocation2 + $0x40] sm:$0xf]
      %v670 = vld [vmem:[#allocation2 + $0x44] sm:$0xf]
      %v671 = vld [vmem:[#allocation2 + $0x48] sm:$0xf]
      %v672 = vld [vmem:[#allocation2 + $0x4c] sm:$0xf]
      %v673 = vld [vmem:[#allocation2 + $0x50] sm:$0xf]
      %v674 = vld [vmem:[#allocation2 + $0x54] sm:$0xf]
      %v675 = vld [vmem:[#allocation2 + $0x58] sm:$0xf]
      %v676 = vld [vmem:[#allocation2 + $0x5c] sm:$0xf]
      %v677 = vld [vmem:[#allocation2 + $0x60] sm:$0xf]
      %v678 = vld [vmem:[#allocation2 + $0x64] sm:$0xf]
      %v679 = vld [vmem:[#allocation2 + $0x68] sm:$0xf]
      %v680 = vld [vmem:[#allocation2 + $0x6c] sm:$0xf]
      %v681 = vld [vmem:[#allocation2 + $0x70] sm:$0xf]
      %v682 = vld [vmem:[#allocation2 + $0x74] sm:$0xf]
      %v683 = vld [vmem:[#allocation2 + $0x78] sm:$0xf]
      %v684 = vld [vmem:[#allocation2 + $0x7c] sm:$0xf]
      %v685 = vpack.c.bf16 %v637, %v637
      %v686 = vpack.c.bf16 %v650, %v650
      %v719 = vunpack.c.l.b16 %v653
      %v720 = vunpack.c.l.b16 %v654
      %v721 = vunpack.c.l.b16 %v655
      %v722 = vunpack.c.l.b16 %v656
      %v723 = vunpack.c.l.b16 %v657
      %v724 = vunpack.c.l.b16 %v658
      %v725 = vunpack.c.l.b16 %v659
      %v726 = vunpack.c.l.b16 %v660
      %v727 = vunpack.c.l.b16 %v661
      %v728 = vunpack.c.l.b16 %v662
      %v729 = vunpack.c.l.b16 %v663
      %v730 = vunpack.c.l.b16 %v664
      %v731 = vunpack.c.l.b16 %v665
      %v732 = vunpack.c.l.b16 %v666
      %v733 = vunpack.c.l.b16 %v667
      %v734 = vunpack.c.l.b16 %v668
      %v735 = vunpack.c.l.b16 %v669
      %v736 = vunpack.c.l.b16 %v670
      %v737 = vunpack.c.l.b16 %v671
      %v738 = vunpack.c.l.b16 %v672
      %v739 = vunpack.c.l.b16 %v673
      %v740 = vunpack.c.l.b16 %v674
      %v741 = vunpack.c.l.b16 %v675
      %v742 = vunpack.c.l.b16 %v676
      %v743 = vunpack.c.l.b16 %v677
      %v744 = vunpack.c.l.b16 %v678
      %v745 = vunpack.c.l.b16 %v679
      %v746 = vunpack.c.l.b16 %v680
      %v747 = vunpack.c.l.b16 %v681
      %v748 = vunpack.c.l.b16 %v682
      %v749 = vunpack.c.l.b16 %v683
      %v750 = vunpack.c.l.b16 %v684
      %v751 = vpack.c.b16 %v720, %v719
      %v752 = vpack.c.b16 %v722, %v721
      %v753 = vpack.c.b16 %v724, %v723
      %v754 = vpack.c.b16 %v726, %v725
      %v755 = vpack.c.b16 %v728, %v727
      %v756 = vpack.c.b16 %v730, %v729
      %v757 = vpack.c.b16 %v732, %v731
      %v758 = vpack.c.b16 %v734, %v733
      %v759 = vpack.c.b16 %v736, %v735
      %v760 = vpack.c.b16 %v738, %v737
      %v761 = vpack.c.b16 %v740, %v739
      %v762 = vpack.c.b16 %v742, %v741
      %v763 = vpack.c.b16 %v744, %v743
      %v764 = vpack.c.b16 %v746, %v745
      %v765 = vpack.c.b16 %v748, %v747
      %v766 = vpack.c.b16 %v750, %v749
      %vm767 = vcmask 15360
      %v769 = vsel %vm767, %v751, 0
      %v772 = vsel %vm767, %v752, 0
      %v775 = vsel %vm767, %v753, 0
      %v778 = vsel %vm767, %v754, 0
      %v781 = vsel %vm767, %v755, 0
      %v784 = vsel %vm767, %v756, 0
      %v787 = vsel %vm767, %v757, 0
      %v790 = vsel %vm767, %v758, 0
      %v793 = vsel %vm767, %v759, 0
      %v796 = vsel %vm767, %v760, 0
      %v799 = vsel %vm767, %v761, 0
      %v802 = vsel %vm767, %v762, 0
      %v805 = vsel %vm767, %v763, 0
      %v808 = vsel %vm767, %v764, 0
      %v811 = vsel %vm767, %v765, 0
      %v814 = vsel %vm767, %v766, 0
      %vm816 = vcmask 1040384
      %v818 = vsel %vm816, %v685, 0
      %v821 = vsel %vm816, %v686, 0
      %823 = vmatpush.bf16.msra.mxu0 0
      %824 = vmatpush.bf16.msra.mxu0 0
      %825 = vmatpush.bf16.msra.mxu0 0
      %826 = vmatpush.bf16.msra.mxu0 0
      %827 = vmatpush.bf16.msra.mxu0 0
      %828 = vmatpush.bf16.msra.mxu0 0
      %829 = vmatpush.bf16.msra.mxu0 0
      %830 = vmatpush.bf16.msra.mxu0 %v818
      %831 = vmatmul.bf16.gmra.mxu0 %v769
      %v832 = vpop.f32.mrf.mxu0
      %v833 = vadd.f32 0.0, %v832
      %v834 = vpop.f32.mrf.mxu0
      %v835 = vadd.f32 0.0, %v834
      %836 = vmatmul.bf16.gmra.mxu0 %v772
      %v837 = vpop.f32.mrf.mxu0
      %v838 = vadd.f32 0.0, %v837
      %v839 = vpop.f32.mrf.mxu0
      %v840 = vadd.f32 0.0, %v839
      %841 = vmatmul.bf16.gmra.mxu0 %v775
      %v842 = vpop.f32.mrf.mxu0
      %v843 = vadd.f32 0.0, %v842
      %v844 = vpop.f32.mrf.mxu0
      %v845 = vadd.f32 0.0, %v844
      %846 = vmatmul.bf16.gmra.mxu0 %v778
      %v847 = vpop.f32.mrf.mxu0
      %v848 = vadd.f32 0.0, %v847
      %v849 = vpop.f32.mrf.mxu0
      %v850 = vadd.f32 0.0, %v849
      %851 = vmatmul.bf16.gmra.mxu0 %v781
      %v852 = vpop.f32.mrf.mxu0
      %v853 = vadd.f32 0.0, %v852
      %v854 = vpop.f32.mrf.mxu0
      %v855 = vadd.f32 0.0, %v854
      %856 = vmatmul.bf16.gmra.mxu0 %v784
      %v857 = vpop.f32.mrf.mxu0
      %v858 = vadd.f32 0.0, %v857
      %v859 = vpop.f32.mrf.mxu0
      %v860 = vadd.f32 0.0, %v859
      %861 = vmatmul.bf16.gmra.mxu0 %v787
      %v862 = vpop.f32.mrf.mxu0
      %v863 = vadd.f32 0.0, %v862
      %v864 = vpop.f32.mrf.mxu0
      %v865 = vadd.f32 0.0, %v864
      %866 = vmatmul.bf16.gmra.mxu0 %v790
      %v867 = vpop.f32.mrf.mxu0
      %v868 = vadd.f32 0.0, %v867
      %v869 = vpop.f32.mrf.mxu0
      %v870 = vadd.f32 0.0, %v869
      %871 = vmatmul.bf16.gmra.mxu0 %v793
      %v872 = vpop.f32.mrf.mxu0
      %v873 = vadd.f32 0.0, %v872
      %v874 = vpop.f32.mrf.mxu0
      %v875 = vadd.f32 0.0, %v874
      %876 = vmatmul.bf16.gmra.mxu0 %v796
      %v877 = vpop.f32.mrf.mxu0
      %v878 = vadd.f32 0.0, %v877
      %v879 = vpop.f32.mrf.mxu0
      %v880 = vadd.f32 0.0, %v879
      %881 = vmatmul.bf16.gmra.mxu0 %v799
      %v882 = vpop.f32.mrf.mxu0
      %v883 = vadd.f32 0.0, %v882
      %v884 = vpop.f32.mrf.mxu0
      %v885 = vadd.f32 0.0, %v884
      %886 = vmatmul.bf16.gmra.mxu0 %v802
      %v887 = vpop.f32.mrf.mxu0
      %v888 = vadd.f32 0.0, %v887
      %v889 = vpop.f32.mrf.mxu0
      %v890 = vadd.f32 0.0, %v889
      %891 = vmatmul.bf16.gmra.mxu0 %v805
      %v892 = vpop.f32.mrf.mxu0
      %v893 = vadd.f32 0.0, %v892
      %v894 = vpop.f32.mrf.mxu0
      %v895 = vadd.f32 0.0, %v894
      %896 = vmatmul.bf16.gmra.mxu0 %v808
      %v897 = vpop.f32.mrf.mxu0
      %v898 = vadd.f32 0.0, %v897
      %v899 = vpop.f32.mrf.mxu0
      %v900 = vadd.f32 0.0, %v899
      %901 = vmatmul.bf16.gmra.mxu0 %v811
      %v902 = vpop.f32.mrf.mxu0
      %v903 = vadd.f32 0.0, %v902
      %v904 = vpop.f32.mrf.mxu0
      %v905 = vadd.f32 0.0, %v904
      %906 = vmatmul.bf16.gmra.mxu0 %v814
      %v907 = vpop.f32.mrf.mxu0
      %v908 = vadd.f32 0.0, %v907
      %v909 = vpop.f32.mrf.mxu0
      %v910 = vadd.f32 0.0, %v909
      %911 = vdwg.mxu0
      %912 = vmatpush.bf16.msra.mxu0 0
      %913 = vmatpush.bf16.msra.mxu0 0
      %914 = vmatpush.bf16.msra.mxu0 0
      %915 = vmatpush.bf16.msra.mxu0 0
      %916 = vmatpush.bf16.msra.mxu0 0
      %917 = vmatpush.bf16.msra.mxu0 0
      %918 = vmatpush.bf16.msra.mxu0 0
      %919 = vmatpush.bf16.msra.mxu0 %v821
      %920 = vmatmul.bf16.gmra.mxu0 %v769
      %v921 = vpop.f32.mrf.mxu0
      %v922 = vadd.f32 0.0, %v921
      %v923 = vpop.f32.mrf.mxu0
      %v924 = vadd.f32 0.0, %v923
      %925 = vmatmul.bf16.gmra.mxu0 %v772
      %v926 = vpop.f32.mrf.mxu0
      %v927 = vadd.f32 0.0, %v926
      %v928 = vpop.f32.mrf.mxu0
      %v929 = vadd.f32 0.0, %v928
      %930 = vmatmul.bf16.gmra.mxu0 %v775
      %v931 = vpop.f32.mrf.mxu0
      %v932 = vadd.f32 0.0, %v931
      %v933 = vpop.f32.mrf.mxu0
      %v934 = vadd.f32 0.0, %v933
      %935 = vmatmul.bf16.gmra.mxu0 %v778
      %v936 = vpop.f32.mrf.mxu0
      %v937 = vadd.f32 0.0, %v936
      %v938 = vpop.f32.mrf.mxu0
      %v939 = vadd.f32 0.0, %v938
      %940 = vmatmul.bf16.gmra.mxu0 %v781
      %v941 = vpop.f32.mrf.mxu0
      %v942 = vadd.f32 0.0, %v941
      %v943 = vpop.f32.mrf.mxu0
      %v944 = vadd.f32 0.0, %v943
      %945 = vmatmul.bf16.gmra.mxu0 %v784
      %v946 = vpop.f32.mrf.mxu0
      %v947 = vadd.f32 0.0, %v946
      %v948 = vpop.f32.mrf.mxu0
      %v949 = vadd.f32 0.0, %v948
      %950 = vmatmul.bf16.gmra.mxu0 %v787
      %v951 = vpop.f32.mrf.mxu0
      %v952 = vadd.f32 0.0, %v951
      %v953 = vpop.f32.mrf.mxu0
      %v954 = vadd.f32 0.0, %v953
      %955 = vmatmul.bf16.gmra.mxu0 %v790
      %v956 = vpop.f32.mrf.mxu0
      %v957 = vadd.f32 0.0, %v956
      %v958 = vpop.f32.mrf.mxu0
      %v959 = vadd.f32 0.0, %v958
      %960 = vmatmul.bf16.gmra.mxu0 %v793
      %v961 = vpop.f32.mrf.mxu0
      %v962 = vadd.f32 0.0, %v961
      %v963 = vpop.f32.mrf.mxu0
      %v964 = vadd.f32 0.0, %v963
      %965 = vmatmul.bf16.gmra.mxu0 %v796
      %v966 = vpop.f32.mrf.mxu0
      %v967 = vadd.f32 0.0, %v966
      %v968 = vpop.f32.mrf.mxu0
      %v969 = vadd.f32 0.0, %v968
      %970 = vmatmul.bf16.gmra.mxu0 %v799
      %v971 = vpop.f32.mrf.mxu0
      %v972 = vadd.f32 0.0, %v971
      %v973 = vpop.f32.mrf.mxu0
      %v974 = vadd.f32 0.0, %v973
      %975 = vmatmul.bf16.gmra.mxu0 %v802
      %v976 = vpop.f32.mrf.mxu0
      %v977 = vadd.f32 0.0, %v976
      %v978 = vpop.f32.mrf.mxu0
      %v979 = vadd.f32 0.0, %v978
      %980 = vmatmul.bf16.gmra.mxu0 %v805
      %v981 = vpop.f32.mrf.mxu0
      %v982 = vadd.f32 0.0, %v981
      %v983 = vpop.f32.mrf.mxu0
      %v984 = vadd.f32 0.0, %v983
      %985 = vmatmul.bf16.gmra.mxu0 %v808
      %v986 = vpop.f32.mrf.mxu0
      %v987 = vadd.f32 0.0, %v986
      %v988 = vpop.f32.mrf.mxu0
      %v989 = vadd.f32 0.0, %v988
      %990 = vmatmul.bf16.gmra.mxu0 %v811
      %v991 = vpop.f32.mrf.mxu0
      %v992 = vadd.f32 0.0, %v991
      %v993 = vpop.f32.mrf.mxu0
      %v994 = vadd.f32 0.0, %v993
      %995 = vmatmul.bf16.gmra.mxu0 %v814
      %v996 = vpop.f32.mrf.mxu0
      %v997 = vadd.f32 0.0, %v996
      %v998 = vpop.f32.mrf.mxu0
      %v999 = vadd.f32 0.0, %v998
      %1000 = vdwg.mxu0
      %v1001 = vmax.f32 %v833, %v838
      %v1002 = vmax.f32 %v835, %v840
      %v1003 = vmax.f32 %v1001, %v843
      %v1004 = vmax.f32 %v1002, %v845
      %v1005 = vmax.f32 %v1003, %v848
      %v1006 = vmax.f32 %v1004, %v850
      %v1007 = vmax.f32 %v1005, %v853
      %v1008 = vmax.f32 %v1006, %v855
      %v1009 = vmax.f32 %v1007, %v858
      %v1010 = vmax.f32 %v1008, %v860
      %v1011 = vmax.f32 %v1009, %v863
      %v1012 = vmax.f32 %v1010, %v865
      %v1013 = vmax.f32 %v1011, %v868
      %v1014 = vmax.f32 %v1012, %v870
      %v1015 = vmax.f32 %v1013, %v873
      %v1016 = vmax.f32 %v1014, %v875
      %v1017 = vmax.f32 %v1015, %v878
      %v1018 = vmax.f32 %v1016, %v880
      %v1019 = vmax.f32 %v1017, %v883
      %v1020 = vmax.f32 %v1018, %v885
      %v1021 = vmax.f32 %v1019, %v888
      %v1022 = vmax.f32 %v1020, %v890
      %v1023 = vmax.f32 %v1021, %v893
      %v1024 = vmax.f32 %v1022, %v895
      %v1025 = vmax.f32 %v1023, %v898
      %v1026 = vmax.f32 %v1024, %v900
      %v1027 = vmax.f32 %v1025, %v903
      %v1028 = vmax.f32 %v1026, %v905
      %v1029 = vmax.f32 %v1027, %v908
      %v1030 = vmax.f32 %v1028, %v910
      %v1031 = vmax.f32 %v1029, %v1030
      %v1032 = vrot.slane %v1031, 4
      %v1033 = vmax.f32 %v1031, %v1032
      %v1034 = vrot.slane %v1033, 2
      %v1035 = vmax.f32 %v1033, %v1034
      %v1036 = vrot.slane %v1035, 1
      %v1037 = vmax.f32 %v1035, %v1036
      %v1038 = vmax.f32 %v922, %v927
      %v1039 = vmax.f32 %v924, %v929
      %v1040 = vmax.f32 %v1038, %v932
      %v1041 = vmax.f32 %v1039, %v934
      %v1042 = vmax.f32 %v1040, %v937
      %v1043 = vmax.f32 %v1041, %v939
      %v1044 = vmax.f32 %v1042, %v942
      %v1045 = vmax.f32 %v1043, %v944
      %v1046 = vmax.f32 %v1044, %v947
      %v1047 = vmax.f32 %v1045, %v949
      %v1048 = vmax.f32 %v1046, %v952
      %v1049 = vmax.f32 %v1047, %v954
      %v1050 = vmax.f32 %v1048, %v957
      %v1051 = vmax.f32 %v1049, %v959
      %v1052 = vmax.f32 %v1050, %v962
      %v1053 = vmax.f32 %v1051, %v964
      %v1054 = vmax.f32 %v1052, %v967
      %v1055 = vmax.f32 %v1053, %v969
      %v1056 = vmax.f32 %v1054, %v972
      %v1057 = vmax.f32 %v1055, %v974
      %v1058 = vmax.f32 %v1056, %v977
      %v1059 = vmax.f32 %v1057, %v979
      %v1060 = vmax.f32 %v1058, %v982
      %v1061 = vmax.f32 %v1059, %v984
      %v1062 = vmax.f32 %v1060, %v987
      %v1063 = vmax.f32 %v1061, %v989
      %v1064 = vmax.f32 %v1062, %v992
      %v1065 = vmax.f32 %v1063, %v994
      %v1066 = vmax.f32 %v1064, %v997
      %v1067 = vmax.f32 %v1065, %v999
      %v1068 = vmax.f32 %v1066, %v1067
      %v1069 = vrot.slane %v1068, 4
      %v1070 = vmax.f32 %v1068, %v1069
      %v1071 = vrot.slane %v1070, 2
      %v1072 = vmax.f32 %v1070, %v1071
      %v1073 = vrot.slane %v1072, 1
      %v1074 = vmax.f32 %v1072, %v1073
      %v1075 = vsub.f32 %v833, %v1037
      %v1076 = vsub.f32 %v922, %v1074
      %v1077 = vsub.f32 %v835, %v1037
      %v1078 = vsub.f32 %v924, %v1074
      %v1079 = vsub.f32 %v838, %v1037
      %v1080 = vsub.f32 %v927, %v1074
      %v1081 = vsub.f32 %v840, %v1037
      %v1082 = vsub.f32 %v929, %v1074
      %v1083 = vsub.f32 %v843, %v1037
      %v1084 = vsub.f32 %v932, %v1074
      %v1085 = vsub.f32 %v845, %v1037
      %v1086 = vsub.f32 %v934, %v1074
      %v1087 = vsub.f32 %v848, %v1037
      %v1088 = vsub.f32 %v937, %v1074
      %v1089 = vsub.f32 %v850, %v1037
      %v1090 = vsub.f32 %v939, %v1074
      %v1091 = vsub.f32 %v853, %v1037
      %v1092 = vsub.f32 %v942, %v1074
      %v1093 = vsub.f32 %v855, %v1037
      %v1094 = vsub.f32 %v944, %v1074
      %v1095 = vsub.f32 %v858, %v1037
      %v1096 = vsub.f32 %v947, %v1074
      %v1097 = vsub.f32 %v860, %v1037
      %v1098 = vsub.f32 %v949, %v1074
      %v1099 = vsub.f32 %v863, %v1037
      %v1100 = vsub.f32 %v952, %v1074
      %v1101 = vsub.f32 %v865, %v1037
      %v1102 = vsub.f32 %v954, %v1074
      %v1103 = vsub.f32 %v868, %v1037
      %v1104 = vsub.f32 %v957, %v1074
      %v1105 = vsub.f32 %v870, %v1037
      %v1106 = vsub.f32 %v959, %v1074
      %v1107 = vsub.f32 %v873, %v1037
      %v1108 = vsub.f32 %v962, %v1074
      %v1109 = vsub.f32 %v875, %v1037
      %v1110 = vsub.f32 %v964, %v1074
      %v1111 = vsub.f32 %v878, %v1037
      %v1112 = vsub.f32 %v967, %v1074
      %v1113 = vsub.f32 %v880, %v1037
      %v1114 = vsub.f32 %v969, %v1074
      %v1115 = vsub.f32 %v883, %v1037
      %v1116 = vsub.f32 %v972, %v1074
      %v1117 = vsub.f32 %v885, %v1037
      %v1118 = vsub.f32 %v974, %v1074
      %v1119 = vsub.f32 %v888, %v1037
      %v1120 = vsub.f32 %v977, %v1074
      %v1121 = vsub.f32 %v890, %v1037
      %v1122 = vsub.f32 %v979, %v1074
      %v1123 = vsub.f32 %v893, %v1037
      %v1124 = vsub.f32 %v982, %v1074
      %v1125 = vsub.f32 %v895, %v1037
      %v1126 = vsub.f32 %v984, %v1074
      %v1127 = vsub.f32 %v898, %v1037
      %v1128 = vsub.f32 %v987, %v1074
      %v1129 = vsub.f32 %v900, %v1037
      %v1130 = vsub.f32 %v989, %v1074
      %v1131 = vsub.f32 %v903, %v1037
      %v1132 = vsub.f32 %v992, %v1074
      %v1133 = vsub.f32 %v905, %v1037
      %v1134 = vsub.f32 %v994, %v1074
      %v1135 = vsub.f32 %v908, %v1037
      %v1136 = vsub.f32 %v997, %v1074
      %v1137 = vsub.f32 %v910, %v1037
      %v1138 = vsub.f32 %v999, %v1074
      %v1139 = vpack.c.bf16 %v1077, %v1075
      %v1140 = vpack.c.bf16 %v1078, %v1076
      %v1141 = vpack.c.bf16 %v1081, %v1079
      %v1142 = vpack.c.bf16 %v1082, %v1080
      %v1143 = vpack.c.bf16 %v1085, %v1083
      %v1144 = vpack.c.bf16 %v1086, %v1084
      %v1145 = vpack.c.bf16 %v1089, %v1087
      %v1146 = vpack.c.bf16 %v1090, %v1088
      %v1147 = vpack.c.bf16 %v1093, %v1091
      %v1148 = vpack.c.bf16 %v1094, %v1092
      %v1149 = vpack.c.bf16 %v1097, %v1095
      %v1150 = vpack.c.bf16 %v1098, %v1096
      %v1151 = vpack.c.bf16 %v1101, %v1099
      %v1152 = vpack.c.bf16 %v1102, %v1100
      %v1153 = vpack.c.bf16 %v1105, %v1103
      %v1154 = vpack.c.bf16 %v1106, %v1104
      %v1155 = vpack.c.bf16 %v1109, %v1107
      %v1156 = vpack.c.bf16 %v1110, %v1108
      %v1157 = vpack.c.bf16 %v1113, %v1111
      %v1158 = vpack.c.bf16 %v1114, %v1112
      %v1159 = vpack.c.bf16 %v1117, %v1115
      %v1160 = vpack.c.bf16 %v1118, %v1116
      %v1161 = vpack.c.bf16 %v1121, %v1119
      %v1162 = vpack.c.bf16 %v1122, %v1120
      %v1163 = vpack.c.bf16 %v1125, %v1123
      %v1164 = vpack.c.bf16 %v1126, %v1124
      %v1165 = vpack.c.bf16 %v1129, %v1127
      %v1166 = vpack.c.bf16 %v1130, %v1128
      %v1167 = vpack.c.bf16 %v1133, %v1131
      %v1168 = vpack.c.bf16 %v1134, %v1132
      %v1169 = vpack.c.bf16 %v1137, %v1135
      %v1170 = vpack.c.bf16 %v1138, %v1136
      %v1171 = vunpack.c.l.bf16 %v1139
      %v1172 = vunpack.c.l.bf16 %v1140
      %v1173 = vunpack.c.h.bf16 %v1139
      %v1174 = vunpack.c.h.bf16 %v1140
      %v1175 = vunpack.c.l.bf16 %v1141
      %v1176 = vunpack.c.l.bf16 %v1142
      %v1177 = vunpack.c.h.bf16 %v1141
      %v1178 = vunpack.c.h.bf16 %v1142
      %v1179 = vunpack.c.l.bf16 %v1143
      %v1180 = vunpack.c.l.bf16 %v1144
      %v1181 = vunpack.c.h.bf16 %v1143
      %v1182 = vunpack.c.h.bf16 %v1144
      %v1183 = vunpack.c.l.bf16 %v1145
      %v1184 = vunpack.c.l.bf16 %v1146
      %v1185 = vunpack.c.h.bf16 %v1145
      %v1186 = vunpack.c.h.bf16 %v1146
      %v1187 = vunpack.c.l.bf16 %v1147
      %v1188 = vunpack.c.l.bf16 %v1148
      %v1189 = vunpack.c.h.bf16 %v1147
      %v1190 = vunpack.c.h.bf16 %v1148
      %v1191 = vunpack.c.l.bf16 %v1149
      %v1192 = vunpack.c.l.bf16 %v1150
      %v1193 = vunpack.c.h.bf16 %v1149
      %v1194 = vunpack.c.h.bf16 %v1150
      %v1195 = vunpack.c.l.bf16 %v1151
      %v1196 = vunpack.c.l.bf16 %v1152
      %v1197 = vunpack.c.h.bf16 %v1151
      %v1198 = vunpack.c.h.bf16 %v1152
      %v1199 = vunpack.c.l.bf16 %v1153
      %v1200 = vunpack.c.l.bf16 %v1154
      %v1201 = vunpack.c.h.bf16 %v1153
      %v1202 = vunpack.c.h.bf16 %v1154
      %v1203 = vunpack.c.l.bf16 %v1155
      %v1204 = vunpack.c.l.bf16 %v1156
      %v1205 = vunpack.c.h.bf16 %v1155
      %v1206 = vunpack.c.h.bf16 %v1156
      %v1207 = vunpack.c.l.bf16 %v1157
      %v1208 = vunpack.c.l.bf16 %v1158
      %v1209 = vunpack.c.h.bf16 %v1157
      %v1210 = vunpack.c.h.bf16 %v1158
      %v1211 = vunpack.c.l.bf16 %v1159
      %v1212 = vunpack.c.l.bf16 %v1160
      %v1213 = vunpack.c.h.bf16 %v1159
      %v1214 = vunpack.c.h.bf16 %v1160
      %v1215 = vunpack.c.l.bf16 %v1161
      %v1216 = vunpack.c.l.bf16 %v1162
      %v1217 = vunpack.c.h.bf16 %v1161
      %v1218 = vunpack.c.h.bf16 %v1162
      %v1219 = vunpack.c.l.bf16 %v1163
      %v1220 = vunpack.c.l.bf16 %v1164
      %v1221 = vunpack.c.h.bf16 %v1163
      %v1222 = vunpack.c.h.bf16 %v1164
      %v1223 = vunpack.c.l.bf16 %v1165
      %v1224 = vunpack.c.l.bf16 %v1166
      %v1225 = vunpack.c.h.bf16 %v1165
      %v1226 = vunpack.c.h.bf16 %v1166
      %v1227 = vunpack.c.l.bf16 %v1167
      %v1228 = vunpack.c.l.bf16 %v1168
      %v1229 = vunpack.c.h.bf16 %v1167
      %v1230 = vunpack.c.h.bf16 %v1168
      %v1231 = vunpack.c.l.bf16 %v1169
      %v1232 = vunpack.c.l.bf16 %v1170
      %v1233 = vunpack.c.h.bf16 %v1169
      %v1234 = vunpack.c.h.bf16 %v1170
      %v1235 = vmul.f32 %v1171, 1.442695
      %v1236 = vpow.pop %v1235
      %v1237 = vmul.f32 %v1172, 1.442695
      %v1238 = vpow.pop %v1237
      %v1239 = vmul.f32 %v1173, 1.442695
      %v1240 = vpow.pop %v1239
      %v1241 = vmul.f32 %v1174, 1.442695
      %v1242 = vpow.pop %v1241
      %v1243 = vmul.f32 %v1175, 1.442695
      %v1244 = vpow.pop %v1243
      %v1245 = vmul.f32 %v1176, 1.442695
      %v1246 = vpow.pop %v1245
      %v1247 = vmul.f32 %v1177, 1.442695
      %v1248 = vpow.pop %v1247
      %v1249 = vmul.f32 %v1178, 1.442695
      %v1250 = vpow.pop %v1249
      %v1251 = vmul.f32 %v1179, 1.442695
      %v1252 = vpow.pop %v1251
      %v1253 = vmul.f32 %v1180, 1.442695
      %v1254 = vpow.pop %v1253
      %v1255 = vmul.f32 %v1181, 1.442695
      %v1256 = vpow.pop %v1255
      %v1257 = vmul.f32 %v1182, 1.442695
      %v1258 = vpow.pop %v1257
      %v1259 = vmul.f32 %v1183, 1.442695
      %v1260 = vpow.pop %v1259
      %v1261 = vmul.f32 %v1184, 1.442695
      %v1262 = vpow.pop %v1261
      %v1263 = vmul.f32 %v1185, 1.442695
      %v1264 = vpow.pop %v1263
      %v1265 = vmul.f32 %v1186, 1.442695
      %v1266 = vpow.pop %v1265
      %v1267 = vmul.f32 %v1187, 1.442695
      %v1268 = vpow.pop %v1267
      %v1269 = vmul.f32 %v1188, 1.442695
      %v1270 = vpow.pop %v1269
      %v1271 = vmul.f32 %v1189, 1.442695
      %v1272 = vpow.pop %v1271
      %v1273 = vmul.f32 %v1190, 1.442695
      %v1274 = vpow.pop %v1273
      %v1275 = vmul.f32 %v1191, 1.442695
      %v1276 = vpow.pop %v1275
      %v1277 = vmul.f32 %v1192, 1.442695
      %v1278 = vpow.pop %v1277
      %v1279 = vmul.f32 %v1193, 1.442695
      %v1280 = vpow.pop %v1279
      %v1281 = vmul.f32 %v1194, 1.442695
      %v1282 = vpow.pop %v1281
      %v1283 = vmul.f32 %v1195, 1.442695
      %v1284 = vpow.pop %v1283
      %v1285 = vmul.f32 %v1196, 1.442695
      %v1286 = vpow.pop %v1285
      %v1287 = vmul.f32 %v1197, 1.442695
      %v1288 = vpow.pop %v1287
      %v1289 = vmul.f32 %v1198, 1.442695
      %v1290 = vpow.pop %v1289
      %v1291 = vmul.f32 %v1199, 1.442695
      %v1292 = vpow.pop %v1291
      %v1293 = vmul.f32 %v1200, 1.442695
      %v1294 = vpow.pop %v1293
      %v1295 = vmul.f32 %v1201, 1.442695
      %v1296 = vpow.pop %v1295
      %v1297 = vmul.f32 %v1202, 1.442695
      %v1298 = vpow.pop %v1297
      %v1299 = vmul.f32 %v1203, 1.442695
      %v1300 = vpow.pop %v1299
      %v1301 = vmul.f32 %v1204, 1.442695
      %v1302 = vpow.pop %v1301
      %v1303 = vmul.f32 %v1205, 1.442695
      %v1304 = vpow.pop %v1303
      %v1305 = vmul.f32 %v1206, 1.442695
      %v1306 = vpow.pop %v1305
      %v1307 = vmul.f32 %v1207, 1.442695
      %v1308 = vpow.pop %v1307
      %v1309 = vmul.f32 %v1208, 1.442695
      %v1310 = vpow.pop %v1309
      %v1311 = vmul.f32 %v1209, 1.442695
      %v1312 = vpow.pop %v1311
      %v1313 = vmul.f32 %v1210, 1.442695
      %v1314 = vpow.pop %v1313
      %v1315 = vmul.f32 %v1211, 1.442695
      %v1316 = vpow.pop %v1315
      %v1317 = vmul.f32 %v1212, 1.442695
      %v1318 = vpow.pop %v1317
      %v1319 = vmul.f32 %v1213, 1.442695
      %v1320 = vpow.pop %v1319
      %v1321 = vmul.f32 %v1214, 1.442695
      %v1322 = vpow.pop %v1321
      %v1323 = vmul.f32 %v1215, 1.442695
      %v1324 = vpow.pop %v1323
      %v1325 = vmul.f32 %v1216, 1.442695
      %v1326 = vpow.pop %v1325
      %v1327 = vmul.f32 %v1217, 1.442695
      %v1328 = vpow.pop %v1327
      %v1329 = vmul.f32 %v1218, 1.442695
      %v1330 = vpow.pop %v1329
      %v1331 = vmul.f32 %v1219, 1.442695
      %v1332 = vpow.pop %v1331
      %v1333 = vmul.f32 %v1220, 1.442695
      %v1334 = vpow.pop %v1333
      %v1335 = vmul.f32 %v1221, 1.442695
      %v1336 = vpow.pop %v1335
      %v1337 = vmul.f32 %v1222, 1.442695
      %v1338 = vpow.pop %v1337
      %v1339 = vmul.f32 %v1223, 1.442695
      %v1340 = vpow.pop %v1339
      %v1341 = vmul.f32 %v1224, 1.442695
      %v1342 = vpow.pop %v1341
      %v1343 = vmul.f32 %v1225, 1.442695
      %v1344 = vpow.pop %v1343
      %v1345 = vmul.f32 %v1226, 1.442695
      %v1346 = vpow.pop %v1345
      %v1347 = vmul.f32 %v1227, 1.442695
      %v1348 = vpow.pop %v1347
      %v1349 = vmul.f32 %v1228, 1.442695
      %v1350 = vpow.pop %v1349
      %v1351 = vmul.f32 %v1229, 1.442695
      %v1352 = vpow.pop %v1351
      %v1353 = vmul.f32 %v1230, 1.442695
      %v1354 = vpow.pop %v1353
      %v1355 = vmul.f32 %v1231, 1.442695
      %v1356 = vpow.pop %v1355
      %v1357 = vmul.f32 %v1232, 1.442695
      %v1358 = vpow.pop %v1357
      %v1359 = vmul.f32 %v1233, 1.442695
      %v1360 = vpow.pop %v1359
      %v1361 = vmul.f32 %v1234, 1.442695
      %v1362 = vpow.pop %v1361
      %v1363 = vpack.c.bf16 %v1240, %v1236
      %v1364 = vpack.c.bf16 %v1242, %v1238
      %v1365 = vpack.c.bf16 %v1248, %v1244
      %v1366 = vpack.c.bf16 %v1250, %v1246
      %v1367 = vpack.c.bf16 %v1256, %v1252
      %v1368 = vpack.c.bf16 %v1258, %v1254
      %v1369 = vpack.c.bf16 %v1264, %v1260
      %v1370 = vpack.c.bf16 %v1266, %v1262
      %v1371 = vpack.c.bf16 %v1272, %v1268
      %v1372 = vpack.c.bf16 %v1274, %v1270
      %v1373 = vpack.c.bf16 %v1280, %v1276
      %v1374 = vpack.c.bf16 %v1282, %v1278
      %v1375 = vpack.c.bf16 %v1288, %v1284
      %v1376 = vpack.c.bf16 %v1290, %v1286
      %v1377 = vpack.c.bf16 %v1296, %v1292
      %v1378 = vpack.c.bf16 %v1298, %v1294
      %v1379 = vpack.c.bf16 %v1304, %v1300
      %v1380 = vpack.c.bf16 %v1306, %v1302
      %v1381 = vpack.c.bf16 %v1312, %v1308
      %v1382 = vpack.c.bf16 %v1314, %v1310
      %v1383 = vpack.c.bf16 %v1320, %v1316
      %v1384 = vpack.c.bf16 %v1322, %v1318
      %v1385 = vpack.c.bf16 %v1328, %v1324
      %v1386 = vpack.c.bf16 %v1330, %v1326
      %v1387 = vpack.c.bf16 %v1336, %v1332
      %v1388 = vpack.c.bf16 %v1338, %v1334
      %v1389 = vpack.c.bf16 %v1344, %v1340
      %v1390 = vpack.c.bf16 %v1346, %v1342
      %v1391 = vpack.c.bf16 %v1352, %v1348
      %v1392 = vpack.c.bf16 %v1354, %v1350
      %v1393 = vpack.c.bf16 %v1360, %v1356
      %v1394 = vpack.c.bf16 %v1362, %v1358
      %v1395 = vunpack.c.l.bf16 %v1363
      %v1396 = vunpack.c.l.bf16 %v1364
      %v1397 = vunpack.c.h.bf16 %v1363
      %v1398 = vunpack.c.h.bf16 %v1364
      %v1399 = vunpack.c.l.bf16 %v1365
      %v1400 = vunpack.c.l.bf16 %v1366
      %v1401 = vunpack.c.h.bf16 %v1365
      %v1402 = vunpack.c.h.bf16 %v1366
      %v1403 = vunpack.c.l.bf16 %v1367
      %v1404 = vunpack.c.l.bf16 %v1368
      %v1405 = vunpack.c.h.bf16 %v1367
      %v1406 = vunpack.c.h.bf16 %v1368
      %v1407 = vunpack.c.l.bf16 %v1369
      %v1408 = vunpack.c.l.bf16 %v1370
      %v1409 = vunpack.c.h.bf16 %v1369
      %v1410 = vunpack.c.h.bf16 %v1370
      %v1411 = vunpack.c.l.bf16 %v1371
      %v1412 = vunpack.c.l.bf16 %v1372
      %v1413 = vunpack.c.h.bf16 %v1371
      %v1414 = vunpack.c.h.bf16 %v1372
      %v1415 = vunpack.c.l.bf16 %v1373
      %v1416 = vunpack.c.l.bf16 %v1374
      %v1417 = vunpack.c.h.bf16 %v1373
      %v1418 = vunpack.c.h.bf16 %v1374
      %v1419 = vunpack.c.l.bf16 %v1375
      %v1420 = vunpack.c.l.bf16 %v1376
      %v1421 = vunpack.c.h.bf16 %v1375
      %v1422 = vunpack.c.h.bf16 %v1376
      %v1423 = vunpack.c.l.bf16 %v1377
      %v1424 = vunpack.c.l.bf16 %v1378
      %v1425 = vunpack.c.h.bf16 %v1377
      %v1426 = vunpack.c.h.bf16 %v1378
      %v1427 = vunpack.c.l.bf16 %v1379
      %v1428 = vunpack.c.l.bf16 %v1380
      %v1429 = vunpack.c.h.bf16 %v1379
      %v1430 = vunpack.c.h.bf16 %v1380
      %v1431 = vunpack.c.l.bf16 %v1381
      %v1432 = vunpack.c.l.bf16 %v1382
      %v1433 = vunpack.c.h.bf16 %v1381
      %v1434 = vunpack.c.h.bf16 %v1382
      %v1435 = vunpack.c.l.bf16 %v1383
      %v1436 = vunpack.c.l.bf16 %v1384
      %v1437 = vunpack.c.h.bf16 %v1383
      %v1438 = vunpack.c.h.bf16 %v1384
      %v1439 = vunpack.c.l.bf16 %v1385
      %v1440 = vunpack.c.l.bf16 %v1386
      %v1441 = vunpack.c.h.bf16 %v1385
      %v1442 = vunpack.c.h.bf16 %v1386
      %v1443 = vunpack.c.l.bf16 %v1387
      %v1444 = vunpack.c.l.bf16 %v1388
      %v1445 = vunpack.c.h.bf16 %v1387
      %v1446 = vunpack.c.h.bf16 %v1388
      %v1447 = vunpack.c.l.bf16 %v1389
      %v1448 = vunpack.c.l.bf16 %v1390
      %v1449 = vunpack.c.h.bf16 %v1389
      %v1450 = vunpack.c.h.bf16 %v1390
      %v1451 = vunpack.c.l.bf16 %v1391
      %v1452 = vunpack.c.l.bf16 %v1392
      %v1453 = vunpack.c.h.bf16 %v1391
      %v1454 = vunpack.c.h.bf16 %v1392
      %v1455 = vunpack.c.l.bf16 %v1393
      %v1456 = vunpack.c.l.bf16 %v1394
      %v1457 = vunpack.c.h.bf16 %v1393
      %v1458 = vunpack.c.h.bf16 %v1394
      %v1459 = vadd.f32 %v1395, %v1397
      %v1460 = vadd.f32 %v1459, %v1399
      %v1461 = vadd.f32 %v1460, %v1401
      %v1462 = vadd.f32 %v1461, %v1403
      %v1463 = vadd.f32 %v1462, %v1405
      %v1464 = vadd.f32 %v1463, %v1407
      %v1465 = vadd.f32 %v1464, %v1409
      %v1466 = vadd.f32 %v1465, %v1411
      %v1467 = vadd.f32 %v1466, %v1413
      %v1468 = vadd.f32 %v1467, %v1415
      %v1469 = vadd.f32 %v1468, %v1417
      %v1470 = vadd.f32 %v1469, %v1419
      %v1471 = vadd.f32 %v1470, %v1421
      %v1472 = vadd.f32 %v1471, %v1423
      %v1473 = vadd.f32 %v1472, %v1425
      %v1474 = vadd.f32 %v1473, %v1427
      %v1475 = vadd.f32 %v1474, %v1429
      %v1476 = vadd.f32 %v1475, %v1431
      %v1477 = vadd.f32 %v1476, %v1433
      %v1478 = vadd.f32 %v1477, %v1435
      %v1479 = vadd.f32 %v1478, %v1437
      %v1480 = vadd.f32 %v1479, %v1439
      %v1481 = vadd.f32 %v1480, %v1441
      %v1482 = vadd.f32 %v1481, %v1443
      %v1483 = vadd.f32 %v1482, %v1445
      %v1484 = vadd.f32 %v1483, %v1447
      %v1485 = vadd.f32 %v1484, %v1449
      %v1486 = vadd.f32 %v1485, %v1451
      %v1487 = vadd.f32 %v1486, %v1453
      %v1488 = vadd.f32 %v1487, %v1455
      %v1489 = vadd.f32 %v1488, %v1457
      %v1490 = vrot.slane %v1489, 4
      %v1491 = vadd.f32 %v1489, %v1490
      %v1492 = vrot.slane %v1491, 2
      %v1493 = vadd.f32 %v1491, %v1492
      %v1494 = vrot.slane %v1493, 1
      %v1495 = vadd.f32 %v1493, %v1494
      %v1496 = vadd.f32 %v1396, %v1398
      %v1497 = vadd.f32 %v1496, %v1400
      %v1498 = vadd.f32 %v1497, %v1402
      %v1499 = vadd.f32 %v1498, %v1404
      %v1500 = vadd.f32 %v1499, %v1406
      %v1501 = vadd.f32 %v1500, %v1408
      %v1502 = vadd.f32 %v1501, %v1410
      %v1503 = vadd.f32 %v1502, %v1412
      %v1504 = vadd.f32 %v1503, %v1414
      %v1505 = vadd.f32 %v1504, %v1416
      %v1506 = vadd.f32 %v1505, %v1418
      %v1507 = vadd.f32 %v1506, %v1420
      %v1508 = vadd.f32 %v1507, %v1422
      %v1509 = vadd.f32 %v1508, %v1424
      %v1510 = vadd.f32 %v1509, %v1426
      %v1511 = vadd.f32 %v1510, %v1428
      %v1512 = vadd.f32 %v1511, %v1430
      %v1513 = vadd.f32 %v1512, %v1432
      %v1514 = vadd.f32 %v1513, %v1434
      %v1515 = vadd.f32 %v1514, %v1436
      %v1516 = vadd.f32 %v1515, %v1438
      %v1517 = vadd.f32 %v1516, %v1440
      %v1518 = vadd.f32 %v1517, %v1442
      %v1519 = vadd.f32 %v1518, %v1444
      %v1520 = vadd.f32 %v1519, %v1446
      %v1521 = vadd.f32 %v1520, %v1448
      %v1522 = vadd.f32 %v1521, %v1450
      %v1523 = vadd.f32 %v1522, %v1452
      %v1524 = vadd.f32 %v1523, %v1454
      %v1525 = vadd.f32 %v1524, %v1456
      %v1526 = vadd.f32 %v1525, %v1458
      %v1527 = vrot.slane %v1526, 4
      %v1528 = vadd.f32 %v1526, %v1527
      %v1529 = vrot.slane %v1528, 2
      %v1530 = vadd.f32 %v1528, %v1529
      %v1531 = vrot.slane %v1530, 1
      %v1532 = vadd.f32 %v1530, %v1531
      %v1533 = vld [vmem:[#allocation3] sm:$0xff]
      %v1534 = vld [vmem:[#allocation3 + $0x8] sm:$0xff]
      %v1537 = vunpack.c.l.b16 %v1533
      %v1538 = vunpack.c.h.b16 %v1533
      %v1539 = vunpack.c.l.b16 %v1534
      %v1540 = vunpack.c.h.b16 %v1534
      %v1541 = vpack.c.b16 %v1539, %v1537
      %v1542 = vpack.c.b16 %v1540, %v1538
      %1545 = vmatpush.bf16.msra.mxu0 %v1377
      %1546 = vmatpush.bf16.msra.mxu0 %v1375
      %1547 = vmatpush.bf16.msra.mxu0 %v1373
      %1548 = vmatpush.bf16.msra.mxu0 %v1371
      %1549 = vmatpush.bf16.msra.mxu0 %v1369
      %1550 = vmatpush.bf16.msra.mxu0 %v1367
      %1551 = vmatpush.bf16.msra.mxu0 %v1365
      %1552 = vmatpush.bf16.msra.mxu0 %v1363
      %1553 = vmatmul.bf16.gmra.mxu0 %v1541
      %v1554 = vpop.f32.mrf.mxu0
      %v1555 = vadd.f32 0.0, %v1554
      %v1556 = vpop.f32.mrf.mxu0
      %v1557 = vadd.f32 0.0, %v1556
      %1558 = vdwg.mxu0
      %1559 = vmatpush.bf16.msra.mxu0 %v1393
      %1560 = vmatpush.bf16.msra.mxu0 %v1391
      %1561 = vmatpush.bf16.msra.mxu0 %v1389
      %1562 = vmatpush.bf16.msra.mxu0 %v1387
      %1563 = vmatpush.bf16.msra.mxu0 %v1385
      %1564 = vmatpush.bf16.msra.mxu0 %v1383
      %1565 = vmatpush.bf16.msra.mxu0 %v1381
      %1566 = vmatpush.bf16.msra.mxu0 %v1379
      %1567 = vmatmul.bf16.gmra.mxu0 %v1542
      %v1568 = vpop.f32.mrf.mxu0
      %v1569 = vadd.f32 %v1555, %v1568
      %v1570 = vpop.f32.mrf.mxu0
      %v1571 = vadd.f32 %v1557, %v1570
      %1572 = vdwg.mxu0
      %1573 = vmatpush.bf16.msra.mxu0 %v1378
      %1574 = vmatpush.bf16.msra.mxu0 %v1376
      %1575 = vmatpush.bf16.msra.mxu0 %v1374
      %1576 = vmatpush.bf16.msra.mxu0 %v1372
      %1577 = vmatpush.bf16.msra.mxu0 %v1370
      %1578 = vmatpush.bf16.msra.mxu0 %v1368
      %1579 = vmatpush.bf16.msra.mxu0 %v1366
      %1580 = vmatpush.bf16.msra.mxu0 %v1364
      %1581 = vmatmul.bf16.gmra.mxu0 %v1541
      %v1582 = vpop.f32.mrf.mxu0
      %v1583 = vadd.f32 0.0, %v1582
      %v1584 = vpop.f32.mrf.mxu0
      %v1585 = vadd.f32 0.0, %v1584
      %1586 = vdwg.mxu0
      %1587 = vmatpush.bf16.msra.mxu0 %v1394
      %1588 = vmatpush.bf16.msra.mxu0 %v1392
      %1589 = vmatpush.bf16.msra.mxu0 %v1390
      %1590 = vmatpush.bf16.msra.mxu0 %v1388
      %1591 = vmatpush.bf16.msra.mxu0 %v1386
      %1592 = vmatpush.bf16.msra.mxu0 %v1384
      %1593 = vmatpush.bf16.msra.mxu0 %v1382
      %1594 = vmatpush.bf16.msra.mxu0 %v1380
      %1595 = vmatmul.bf16.gmra.mxu0 %v1542
      %v1596 = vpop.f32.mrf.mxu0
      %v1597 = vadd.f32 %v1583, %v1596
      %v1598 = vpop.f32.mrf.mxu0
      %v1599 = vadd.f32 %v1585, %v1598
      %1600 = vdwg.mxu0
      %s1601 = sld [smem:[#allocation6]]
      %v1602 = vrcp.pop %v1495
      %v1603 = vrcp.pop %v1532
      %v1604 = vstv %s1601
      %v1605 = vmul.f32 %v1604, %v1602
      %v1606 = vmul.f32 %v1604, %v1603
      %v1607 = vmul.f32 %v1569, %v1605
      %v1608 = vmul.f32 %v1597, %v1606
      %v1609 = vmul.f32 %v1571, %v1605
      %v1610 = vmul.f32 %v1599, %v1606
      %v1611 = vadd.f32 %v1607, %v610
      %v1612 = vadd.f32 %v1608, %v611
      %v1613 = vadd.f32 %v1609, %v612
      %v1614 = vadd.f32 %v1610, %v613
      %1615 = vst [vmem:[%s345] sm:$0xff] %v1611
      %1616 = vst [vmem:[%s345 + $0x8] sm:$0xff] %v1612
      %1617 = vst [vmem:[%s345 + $0x10] sm:$0xff] %v1613
      %1618 = vst [vmem:[%s345 + $0x18] sm:$0xff] %v1614
      %s1619 = smul.u32 2, %s26
      %p1620 = scmp.lt.s32.totalorder %s25, 1
      %s1621 = scalar_select %p1620, %s25, 1
      %p1622 = scmp.lt.s32.totalorder %s1619, 1
      %s1623 = scalar_select %p1622, %s1619, 1
      %s1624 = smul.addr %s1621, 4
      %s1625 = sadd.s32 %s1623, %s1624
      %s1626 = smul.addr %s1625, 8
      %s1627 = scalar_lea.vmem %s9, %s1626
      // Predicated region
      $region76: #{position_attention_module.1} parent=51 // pred_check
        %p1628 = pneg %p228
      $region77: #{position_attention_module.1} parent=51 // pred_check_branch
        %1630 = sbr.rel (%p1628) target = $region79
      $region78: #{position_attention_module.1} parent=51 // pred_region
        %s1631 = smul.u32 2, %s26
      $region79: #{position_attention_module.1} parent=51 // pred_fallthru
        _
    $region52: #{position_attention_module.1} parent=5 // pred_fallthru
      _
    %p1632 = scmp.le.s32.totalorder 2, %s16
    // Predicated region
    $region80: #{position_attention_module.1} parent=5 // pred_check
      %p1633 = pneg %p1632
    $region81: #{position_attention_module.1} parent=5 // pred_check_branch
      %1635 = sbr.rel (%p1633) target = $region83
    $region82: #{position_attention_module.1} parent=5 // pred_region
      %s1636 = ssub.s32 %s16, 2
      // Predicated region
      $region84: #{position_attention_module.1} parent=82 // pred_check
        %p1637 = pneg %p234
      $region85: #{position_attention_module.1} parent=82 // pred_check_branch
        %1639 = sbr.rel (%p1637) target = $region87
      $region86: #{position_attention_module.1} parent=82 // pred_region
        %s1640 = smul.u32 2, %s28
        %p1641 = scmp.lt.s32.totalorder %s27, 1
        %s1642 = scalar_select %p1641, %s27, 1
        %p1643 = scmp.lt.s32.totalorder %s1640, 1
        %s1644 = scalar_select %p1643, %s1640, 1
        %s1645 = smul.addr %s1642, 4
        %s1646 = sadd.s32 %s1644, %s1645
        %s1647 = smul.addr %s1646, 8
        %s1648 = scalar_lea.vmem %s9, %s1647
      $region87: #{position_attention_module.1} parent=82 // pred_fallthru
        _
    $region83: #{position_attention_module.1} parent=5 // pred_fallthru
      _
  $region6: #{position_attention_module.1} parent=0 // loop_footer
    %s20 = sadd.s32 1, %s16
  $region7: #{position_attention_module.1} parent=0 // loop_footer_branch
    %15 = sbr.rel target = $region3
  $region8: #{position_attention_module.1} parent=0 // loop_exit
    _
  %1649 = vsyncmov [#allocation5]
  %s1650 = vpop.sfrf %1649
  %p1651 = scmp.eq.s32.totalorder %s1650, 0
  %p1652 = pneg %p1651
  %1654 = shalt.err (%p1652)

</llo_original>
